<compile_context>
chip_gen: v7x
topology: tpu7x:2x2x1
jax: 0.10.0
libtpu: 0.0.40
codegen_flags: <defaults>
</compile_context>

<pallas_src>
import jax
import jax.numpy as jnp
import numpy as np
from jax.experimental import pallas as pl
from jax.experimental.pallas import tpu as pltpu

# ----- small synthetic CLIP-vision config -----
B = 2
C = 3
H = W = 16
PS = 8                      # patch size
GH, GW = H // PS, W // PS
NP = GH * GW                # patches per image = 4
SEQ = NP + 1                # +CLS = 5
BSEQ = B * SEQ              # folded tokens = 10
NPB = B * NP                # folded patch rows = 8 (CLS rows are the last B rows)
D = 32                      # hidden size
NUM_HEADS = 2
HD = D // NUM_HEADS         # 16
MLP = 64
L = 2                       # encoder layers
PD = C * PS * PS            # 192
EPS = 1e-5

# ---- bf16 weight-slab layout  wb : [W_ROWS, 128] ----
# rows [l*D, (l+1)*D)          : attn_w layer l, lanes = q|k|v|o (q pre-scaled)
FC1_ROW0 = L * D              # rows [64, 96): fc1_w, layer l at lanes [l*MLP, (l+1)*MLP)
FC2_ROW0 = FC1_ROW0 + D       # rows [96,160): fc2_w, layer l at lanes [l*D, (l+1)*D)
W_ROWS = FC2_ROW0 + MLP       # 160

# ---- f32 const-slab layout  cs : [CS_ROWS, 128] ----
ROW_GLN = 0                                # pre_g | pre_b | post_g | post_b
ROW_LN = 1                                 # +l : ln1_g | ln1_b | ln2_g | ln2_b
ROW_ATB = ROW_LN + L                       # +l : packed attn bias (q|k|v|o, q pre-scaled)
ROW_MLPB = ROW_ATB + L                     # +l : fc1_b (0:MLP) | fc2_b (MLP:MLP+D)
ROW_BASE = 8                               # +BSEQ : cls/pos "base" embedding (lanes 0:D)
ROW_MASK = ROW_BASE + ((BSEQ + 7) // 8) * 8        # 24, +BSEQ : batch mask tiled x2 heads
ROW_HMASK = ROW_MASK + ((BSEQ + 7) // 8) * 8       # 40, +2*BSEQ : K|V head packing mask
CS_ROWS = ROW_HMASK + ((2 * BSEQ + 7) // 8) * 8    # 64


# ---- reference-style (two-pass) LayerNorm, used by the pure-JAX reference ----
def _layernorm_ref(x, g, b):
    mu = jnp.mean(x, axis=-1, keepdims=True)
    var = jnp.mean((x - mu) ** 2, axis=-1, keepdims=True)
    return (x - mu) * jax.lax.rsqrt(var + EPS) * g + b


# ---- one-pass LayerNorm used inside the kernel ----
def _layernorm_fused(x, g, b):
    inv_d = jnp.float32(1.0 / D)
    s1 = jnp.sum(x, axis=-1, keepdims=True)
    s2 = jnp.sum(x * x, axis=-1, keepdims=True)
    mu = s1 * inv_d
    var = s2 * inv_d - mu * mu
    return (x - mu) * jax.lax.rsqrt(var + EPS) * g + b


def _quick_gelu(x):  # CLIP activation
    return x * jax.nn.sigmoid(1.702 * x)


# ------------------------- Pallas kernel -------------------------
def clip_pooler_kernel(patches_ref, patch_w_ref, wb_ref, cs_ref, out_ref):
    c = cs_ref
    pre_g = c[ROW_GLN:ROW_GLN + 1, 0:D]
    pre_b = c[ROW_GLN:ROW_GLN + 1, D:2 * D]
    post_g = c[ROW_GLN:ROW_GLN + 1, 2 * D:3 * D]
    post_b = c[ROW_GLN:ROW_GLN + 1, 3 * D:4 * D]
    base = c[ROW_BASE:ROW_BASE + BSEQ, 0:D]                     # [BSEQ, D]
    mask2 = c[ROW_MASK:ROW_MASK + BSEQ, 0:2 * BSEQ]             # [BSEQ, 2*BSEQ]
    head_mask = c[ROW_HMASK:ROW_HMASK + 2 * BSEQ, 0:2 * D]      # [2*BSEQ, 2*D]
    fc1_all = wb_ref[FC1_ROW0:FC1_ROW0 + D, :]                  # [D, 128]  (both layers)
    fc2_all = wb_ref[FC2_ROW0:FC2_ROW0 + MLP, :]                # [MLP, 128]

    # Patch embedding for ALL images in one matmul (f32 path); CLS rows are
    # zeros here (they only get cls+pos from `base`), appended as the last B rows.
    pe = jnp.dot(patches_ref[...], patch_w_ref[...],
                 preferred_element_type=jnp.float32)            # [NPB, D]
    h = jnp.concatenate([pe, jnp.zeros((B, D), jnp.float32)], axis=0) + base
    h = _layernorm_fused(h, pre_g, pre_b)                       # [BSEQ, D]

    for l in range(L):
        w_l = wb_ref[l * D:(l + 1) * D, :]                      # [D, 4D] bf16 (q|k|v|o)
        b_l = c[ROW_ATB + l:ROW_ATB + l + 1, :]                 # [1, 4D]
        ln_row = c[ROW_LN + l:ROW_LN + l + 1, :]

        # ---------------- self-attention ----------------
        resid = h
        hn = _layernorm_fused(h, ln_row[:, 0:D], ln_row[:, D:2 * D])
        hn16 = hn.astype(jnp.bfloat16)
        qkv = jnp.dot(hn16, w_l[:, :3 * D],
                      preferred_element_type=jnp.float32) + b_l[:, :3 * D]
        q = qkv[:, :D]                                          # softmax scale folded in
        kv = qkv[:, D:]                                         # [BSEQ, 2D] = K | V
        # block-diagonal head packing: rows 0:BSEQ -> head 0, rows BSEQ: -> head 1
        kv_bd = jnp.concatenate([kv, kv], axis=0) * head_mask   # [2*BSEQ, 2D]
        k_bd = kv_bd[:, :D].astype(jnp.bfloat16)
        v_bd = kv_bd[:, D:].astype(jnp.bfloat16)

        # both heads' scores in ONE MXU push  [BSEQ, 2*BSEQ]
        s = jax.lax.dot_general(q.astype(jnp.bfloat16), k_bd,
                                (((1,), (1,)), ((), ())),
                                preferred_element_type=jnp.float32)
        s = s + mask2                                           # batch block-diag mask
        s0, s1 = s[:, :BSEQ], s[:, BSEQ:]                       # segmented softmax
        p0 = jnp.exp(s0 - jnp.max(s0, axis=-1, keepdims=True))
        p1 = jnp.exp(s1 - jnp.max(s1, axis=-1, keepdims=True))
        p0 = p0 * pl.reciprocal(jnp.sum(p0, axis=-1, keepdims=True), approx=True)
        p1 = p1 * pl.reciprocal(jnp.sum(p1, axis=-1, keepdims=True), approx=True)
        p = jnp.concatenate([p0, p1], axis=-1).astype(jnp.bfloat16)

        # both heads' PV + head assembly in ONE MXU push (heads land in their lanes)
        heads = jnp.dot(p, v_bd, preferred_element_type=jnp.float32)   # [BSEQ, D]
        attn = jnp.dot(heads.astype(jnp.bfloat16), w_l[:, 3 * D:],
                       preferred_element_type=jnp.float32) + b_l[:, 3 * D:]
        h = resid + attn

        # ---------------- MLP ----------------
        resid = h
        hn = _layernorm_fused(h, ln_row[:, 2 * D:3 * D], ln_row[:, 3 * D:4 * D])
        mb = c[ROW_MLPB + l:ROW_MLPB + l + 1, :]
        m = jnp.dot(hn.astype(jnp.bfloat16), fc1_all[:, l * MLP:(l + 1) * MLP],
                    preferred_element_type=jnp.float32) + mb[:, 0:MLP]
        m = _quick_gelu(m)
        m = jnp.dot(m.astype(jnp.bfloat16), fc2_all[:, l * D:(l + 1) * D],
                    preferred_element_type=jnp.float32) + mb[:, MLP:MLP + D]
        h = resid + m

    # pooler_output = post_layernorm(CLS token); CLS rows are the last B rows
    cls_rows = h[NPB:, :]                                       # [B, D] static slice
    out_ref[...] = _layernorm_fused(cls_rows, post_g, post_b)


# ------------------------- pallas_call (built once) -------------------------
def _full(shape):
    return pl.BlockSpec(shape, lambda i: (0, 0))


_pooler_call = pl.pallas_call(
    clip_pooler_kernel,
    out_shape=jax.ShapeDtypeStruct((B, D), jnp.float32),
    grid_spec=pltpu.PrefetchScalarGridSpec(
        num_scalar_prefetch=0,
        grid=(1,),                          # batch folded into rows -> single step
        in_specs=[_full((NPB, PD)),         # per-call patch matrix (f32)
                  _full((PD, D)),           # patch-embed weight (f32)
                  _full((W_ROWS, 128)),     # bf16 weight slab (attn | fc1 | fc2)
                  _full((CS_ROWS, 128))],   # f32 const slab (LN/bias/base/masks)
        out_specs=_full((B, D))),
    compiler_params=pltpu.CompilerParams(dimension_semantics=("arbitrary",)),
)


# ------------------------- one-time parameter packing -------------------------
def pack_params(params):
    """Host-side, called ONCE: packs every constant operand into lane-dense slabs."""
    f32 = np.float32
    scale = 1.0 / (HD ** 0.5)

    aw = np.asarray(params["attn_w"], f32).copy()       # [L, 4, D, D]  (q,k,v,o)
    ab = np.asarray(params["attn_b"], f32).copy()       # [L, 4, 1, D]
    aw[:, 0] *= scale                                    # fold 1/sqrt(HD) into q
    ab[:, 0] *= scale
    attn_w = aw.transpose(0, 2, 1, 3).reshape(L, D, 4 * D)   # lane-dense q|k|v|o
    attn_b = ab.transpose(0, 2, 1, 3).reshape(L, 4 * D)

    wb = np.zeros((W_ROWS, 128), f32)
    for l in range(L):
        wb[l * D:(l + 1) * D, :] = attn_w[l]
        wb[FC1_ROW0:FC1_ROW0 + D, l * MLP:(l + 1) * MLP] = np.asarray(params["fc1_w"][l], f32)
        wb[FC2_ROW0:FC2_ROW0 + MLP, l * D:(l + 1) * D] = np.asarray(params["fc2_w"][l], f32)

    cs = np.zeros((CS_ROWS, 128), f32)
    cs[ROW_GLN, 0:D] = np.asarray(params["pre_g"], f32)[0]
    cs[ROW_GLN, D:2 * D] = np.asarray(params["pre_b"], f32)[0]
    cs[ROW_GLN, 2 * D:3 * D] = np.asarray(params["post_g"], f32)[0]
    cs[ROW_GLN, 3 * D:4 * D] = np.asarray(params["post_b"], f32)[0]
    ln_g = np.asarray(params["ln_g"], f32)
    ln_b = np.asarray(params["ln_b"], f32)
    fc1_b = np.asarray(params["fc1_b"], f32)
    fc2_b = np.asarray(params["fc2_b"], f32)
    for l in range(L):
        cs[ROW_LN + l, 0:D] = ln_g[l, 0, 0]
        cs[ROW_LN + l, D:2 * D] = ln_b[l, 0, 0]
        cs[ROW_LN + l, 2 * D:3 * D] = ln_g[l, 1, 0]
        cs[ROW_LN + l, 3 * D:4 * D] = ln_b[l, 1, 0]
        cs[ROW_ATB + l, :] = attn_b[l]
        cs[ROW_MLPB + l, 0:MLP] = fc1_b[l, 0]
        cs[ROW_MLPB + l, MLP:MLP + D] = fc2_b[l, 0]

    # cls+pos "base" embedding in the folded, CLS-last token order
    pos = np.asarray(params["pos"], f32)                 # [SEQ, D]
    cls = np.asarray(params["cls"], f32)                 # [1, D]
    base = np.zeros((BSEQ, D), f32)
    for b in range(B):
        base[b * NP:(b + 1) * NP] = pos[1:]
        base[NPB + b] = cls[0] + pos[0]
    cs[ROW_BASE:ROW_BASE + BSEQ, 0:D] = base

    # block-diagonal batch mask (attention stays within each image),
    # tiled twice along lanes to cover both head segments of the packed scores
    batch_of_row = np.concatenate([np.repeat(np.arange(B), NP), np.arange(B)])
    m = np.where(batch_of_row[:, None] == batch_of_row[None, :], 0.0, -1e30).astype(f32)
    cs[ROW_MASK:ROW_MASK + BSEQ, 0:2 * BSEQ] = np.concatenate([m, m], axis=1)

    # block-diagonal head mask for packed K|V (rows 0:BSEQ head 0, rows BSEQ: head 1)
    hm = np.zeros((2 * BSEQ, 2 * D), f32)
    hm[:BSEQ, 0:HD] = 1.0
    hm[:BSEQ, D:D + HD] = 1.0
    hm[BSEQ:, HD:D] = 1.0
    hm[BSEQ:, D + HD:2 * D] = 1.0
    cs[ROW_HMASK:ROW_HMASK + 2 * BSEQ, 0:2 * D] = hm

    patch_w = jnp.asarray(params["patch_w"], jnp.float32)
    return patch_w, jnp.asarray(wb, jnp.bfloat16), jnp.asarray(cs, jnp.float32)


# ------------------------- hot path -------------------------
def extract_patches(x):
    # x: [B, C, H, W] (NCHW) -> [B, NP, C*PS*PS], feature order (c, i, j)
    p = x.reshape(B, C, GH, PS, GW, PS)
    p = p.transpose(0, 2, 4, 1, 3, 5)
    return p.reshape(B, NP, PD)


@jax.jit
def _clip_forward(x, patch_w, wb, cs):
    patches = extract_patches(x).reshape(NPB, PD)   # layout-only im2col (fused in XLA)
    return _pooler_call(patches, patch_w, wb, cs)


def make_clip_pooler(params):
    packed = pack_params(params)                    # hoisted out of the hot path
    return lambda x: _clip_forward(x, *packed)


# ------------------------- params / reference -------------------------
def init_params(key):
    ks = jax.random.split(key, 9)
    init = lambda k, s: jax.random.normal(k, s, jnp.float32) * 0.02
    return dict(
        patch_w=init(ks[0], (PD, D)),
        cls=init(ks[1], (1, D)),
        pos=init(ks[2], (SEQ, D)),
        pre_g=jnp.ones((1, D), jnp.float32), pre_b=jnp.zeros((1, D), jnp.float32),
        attn_w=init(ks[3], (L, 4, D, D)),          # q, k, v, out_proj
        attn_b=init(ks[4], (L, 4, 1, D)),
        ln_g=jnp.ones((L, 2, 1, D), jnp.float32), ln_b=jnp.zeros((L, 2, 1, D), jnp.float32),
        fc1_w=init(ks[5], (L, D, MLP)), fc1_b=init(ks[6], (L, 1, MLP)),
        fc2_w=init(ks[7], (L, MLP, D)), fc2_b=init(ks[8], (L, 1, D)),
        post_g=jnp.ones((1, D), jnp.float32), post_b=jnp.zeros((1, D), jnp.float32),
    )


def reference(x, params):
    hp = jax.lax.Precision.HIGHEST
    patches = extract_patches(x)
    outs = []
    scale = 1.0 / (HD ** 0.5)
    for b in range(B):
        pe = jnp.dot(patches[b], params["patch_w"], precision=hp)
        h = jnp.concatenate([params["cls"], pe], axis=0) + params["pos"]
        h = _layernorm_ref(h, params["pre_g"], params["pre_b"])
        for l in range(L):
            resid = h
            hn = _layernorm_ref(h, params["ln_g"][l, 0], params["ln_b"][l, 0])
            q = jnp.dot(hn, params["attn_w"][l, 0], precision=hp) + params["attn_b"][l, 0]
            k = jnp.dot(hn, params["attn_w"][l, 1], precision=hp) + params["attn_b"][l, 1]
            v = jnp.dot(hn, params["attn_w"][l, 2], precision=hp) + params["attn_b"][l, 2]
            heads = []
            for hd in range(NUM_HEADS):
                qh = q[:, hd * HD:(hd + 1) * HD] * scale
                kh = k[:, hd * HD:(hd + 1) * HD]
                vh = v[:, hd * HD:(hd + 1) * HD]
                s = jnp.dot(qh, kh.T, precision=hp)
                p = jax.nn.softmax(s, axis=-1)
                heads.append(jnp.dot(p, vh, precision=hp))
            attn = jnp.concatenate(heads, axis=-1)
            attn = jnp.dot(attn, params["attn_w"][l, 3], precision=hp) + params["attn_b"][l, 3]
            h = resid + attn
            resid = h
            hn = _layernorm_ref(h, params["ln_g"][l, 1], params["ln_b"][l, 1])
            m = jnp.dot(hn, params["fc1_w"][l], precision=hp) + params["fc1_b"][l]
            m = _quick_gelu(m)
            m = jnp.dot(m, params["fc2_w"][l], precision=hp) + params["fc2_b"][l]
            h = resid + m
        outs.append(_layernorm_ref(h[0:1], params["post_g"], params["post_b"])[0])
    return jnp.stack(outs)


if __name__ == "__main__":
    key = jax.random.PRNGKey(0)
    k_x, k_p = jax.random.split(key)
    x = jax.random.normal(k_x, (B, C, H, W), jnp.float32)   # NCHW, like PyTorch
    params = init_params(k_p)

    clip_pooler = make_clip_pooler(params)       # packing happens once, here
    pooled = clip_pooler(x)
    jax.block_until_ready(pooled)
    assert pooled.shape == (B, D)

    ref = reference(x, params)
    np.testing.assert_allclose(np.asarray(pooled), np.asarray(ref),
                               rtol=5e-3, atol=5e-3)
    print("KERNEL_OK")
</pallas_src>

<mosaic_0001>
module attributes {stable_mosaic.version = 11 : i64} {
  func.func @clip_pooler_kernel(%arg0: i32, %arg1: memref<8x192xf32, #tpu.memory_space<vmem>>, %arg2: memref<192x32xf32, #tpu.memory_space<vmem>>, %arg3: memref<160x128xbf16, #tpu.memory_space<vmem>>, %arg4: memref<64x128xf32, #tpu.memory_space<vmem>>, %arg5: memref<2x32xf32, #tpu.memory_space<vmem>>) attributes {dimension_semantics = [#tpu.dimension_semantics<arbitrary>], iteration_bounds = array<i64: 1>, scalar_prefetch = 0 : i64, scratch_operands = 0 : i64, tpu.core_type = #tpu.core_type<tc>, window_params = [{pipeline_mode = #tpu.pipeline_mode<synchronous>, transform_indices = @transform_0, window_bounds = array<i64: 8, 192>}, {pipeline_mode = #tpu.pipeline_mode<synchronous>, transform_indices = @transform_1, window_bounds = array<i64: 192, 32>}, {pipeline_mode = #tpu.pipeline_mode<synchronous>, transform_indices = @transform_2, window_bounds = array<i64: 160, 128>}, {pipeline_mode = #tpu.pipeline_mode<synchronous>, transform_indices = @transform_3, window_bounds = array<i64: 64, 128>}, {pipeline_mode = #tpu.pipeline_mode<synchronous>, transform_indices = @transform_4, window_bounds = array<i64: 2, 32>}]} {
    %c0 = arith.constant 0 : index
    %c0_0 = arith.constant 0 : index
    %0 = vector.load %arg4[%c0, %c0_0] : memref<64x128xf32, #tpu.memory_space<vmem>>, vector<1x32xf32>
    %c0_1 = arith.constant 0 : index
    %c32 = arith.constant 32 : index
    %1 = vector.load %arg4[%c0_1, %c32] : memref<64x128xf32, #tpu.memory_space<vmem>>, vector<1x32xf32>
    %c0_2 = arith.constant 0 : index
    %c64 = arith.constant 64 : index
    %2 = vector.load %arg4[%c0_2, %c64] : memref<64x128xf32, #tpu.memory_space<vmem>>, vector<1x32xf32>
    %c0_3 = arith.constant 0 : index
    %c96 = arith.constant 96 : index
    %3 = vector.load %arg4[%c0_3, %c96] : memref<64x128xf32, #tpu.memory_space<vmem>>, vector<1x32xf32>
    %c8 = arith.constant 8 : index
    %c0_4 = arith.constant 0 : index
    %4 = vector.load %arg4[%c8, %c0_4] : memref<64x128xf32, #tpu.memory_space<vmem>>, vector<10x32xf32>
    %c24 = arith.constant 24 : index
    %c0_5 = arith.constant 0 : index
    %5 = vector.load %arg4[%c24, %c0_5] : memref<64x128xf32, #tpu.memory_space<vmem>>, vector<10x20xf32>
    %c40 = arith.constant 40 : index
    %c0_6 = arith.constant 0 : index
    %6 = vector.load %arg4[%c40, %c0_6] : memref<64x128xf32, #tpu.memory_space<vmem>>, vector<20x64xf32>
    %c64_7 = arith.constant 64 : index
    %c0_8 = arith.constant 0 : index
    %7 = vector.load %arg3[%c64_7, %c0_8] : memref<160x128xbf16, #tpu.memory_space<vmem>>, vector<32x128xbf16>
    %c96_9 = arith.constant 96 : index
    %c0_10 = arith.constant 0 : index
    %8 = vector.load %arg3[%c96_9, %c0_10] : memref<160x128xbf16, #tpu.memory_space<vmem>>, vector<64x128xbf16>
    %c0_11 = arith.constant 0 : index
    %c0_12 = arith.constant 0 : index
    %9 = vector.load %arg1[%c0_11, %c0_12] : memref<8x192xf32, #tpu.memory_space<vmem>>, vector<8x192xf32>
    %c0_13 = arith.constant 0 : index
    %c0_14 = arith.constant 0 : index
    %10 = vector.load %arg2[%c0_13, %c0_14] : memref<192x32xf32, #tpu.memory_space<vmem>>, vector<192x32xf32>
    %cst = arith.constant dense<0.000000e+00> : vector<8x32xf32>
    %11 = tpu.matmul %9, %10, %cst {dimension_numbers = #tpu.dot_dimension_numbers<[1], [0], [0], [1], [0, 0, 1, 1], [], []>} : vector<8x192xf32>, vector<192x32xf32>, vector<8x32xf32> -> vector<8x32xf32>
    %cst_15 = arith.constant 0.000000e+00 : f32
    %12 = vector.broadcast %cst_15 : f32 to vector<2x32xf32>
    %13 = tpu.concatenate %11, %12 in 0 : vector<8x32xf32>, vector<2x32xf32> -> vector<10x32xf32>
    %14 = arith.addf %13, %4 : vector<10x32xf32>
    %cst_16 = arith.constant dense<0.000000e+00> : vector<10xf32>
    %15 = vector.multi_reduction <add>, %14, %cst_16 [1] : vector<10x32xf32> to vector<10xf32>
    %16 = vector.shape_cast %15 : vector<10xf32> to vector<10x1xf32>
    %17 = arith.mulf %14, %14 : vector<10x32xf32>
    %cst_17 = arith.constant dense<0.000000e+00> : vector<10xf32>
    %18 = vector.multi_reduction <add>, %17, %cst_17 [1] : vector<10x32xf32> to vector<10xf32>
    %19 = vector.shape_cast %18 : vector<10xf32> to vector<10x1xf32>
    %cst_18 = arith.constant 3.125000e-02 : f32
    %20 = vector.broadcast %cst_18 : f32 to vector<10x1xf32>
    %21 = arith.mulf %16, %20 : vector<10x1xf32>
    %cst_19 = arith.constant 3.125000e-02 : f32
    %22 = vector.broadcast %cst_19 : f32 to vector<10x1xf32>
    %23 = arith.mulf %19, %22 : vector<10x1xf32>
    %24 = arith.mulf %21, %21 : vector<10x1xf32>
    %25 = arith.subf %23, %24 : vector<10x1xf32>
    %26 = vector.broadcast %21 : vector<10x1xf32> to vector<10x32xf32>
    %27 = arith.subf %14, %26 : vector<10x32xf32>
    %cst_20 = arith.constant 9.99999974E-6 : f32
    %28 = vector.broadcast %cst_20 : f32 to vector<10x1xf32>
    %29 = arith.addf %25, %28 : vector<10x1xf32>
    %30 = math.rsqrt %29 : vector<10x1xf32>
    %31 = vector.broadcast %30 : vector<10x1xf32> to vector<10x32xf32>
    %32 = arith.mulf %27, %31 : vector<10x32xf32>
    %33 = vector.broadcast %0 : vector<1x32xf32> to vector<10x32xf32>
    %34 = arith.mulf %32, %33 : vector<10x32xf32>
    %35 = vector.broadcast %1 : vector<1x32xf32> to vector<10x32xf32>
    %36 = arith.addf %34, %35 : vector<10x32xf32>
    %c0_21 = arith.constant 0 : index
    %c0_22 = arith.constant 0 : index
    %37 = vector.load %arg3[%c0_21, %c0_22] : memref<160x128xbf16, #tpu.memory_space<vmem>>, vector<32x128xbf16>
    %c3 = arith.constant 3 : index
    %c0_23 = arith.constant 0 : index
    %38 = vector.load %arg4[%c3, %c0_23] : memref<64x128xf32, #tpu.memory_space<vmem>>, vector<1x128xf32>
    %c1 = arith.constant 1 : index
    %c0_24 = arith.constant 0 : index
    %39 = vector.load %arg4[%c1, %c0_24] : memref<64x128xf32, #tpu.memory_space<vmem>>, vector<1x128xf32>
    %40 = vector.extract_strided_slice %39 {offsets = [0, 0], sizes = [1, 32], strides = [1, 1]} : vector<1x128xf32> to vector<1x32xf32>
    %41 = vector.extract_strided_slice %39 {offsets = [0, 32], sizes = [1, 32], strides = [1, 1]} : vector<1x128xf32> to vector<1x32xf32>
    %cst_25 = arith.constant dense<0.000000e+00> : vector<10xf32>
    %42 = vector.multi_reduction <add>, %36, %cst_25 [1] : vector<10x32xf32> to vector<10xf32>
    %43 = vector.shape_cast %42 : vector<10xf32> to vector<10x1xf32>
    %44 = arith.mulf %36, %36 : vector<10x32xf32>
    %cst_26 = arith.constant dense<0.000000e+00> : vector<10xf32>
    %45 = vector.multi_reduction <add>, %44, %cst_26 [1] : vector<10x32xf32> to vector<10xf32>
    %46 = vector.shape_cast %45 : vector<10xf32> to vector<10x1xf32>
    %cst_27 = arith.constant 3.125000e-02 : f32
    %47 = vector.broadcast %cst_27 : f32 to vector<10x1xf32>
    %48 = arith.mulf %43, %47 : vector<10x1xf32>
    %cst_28 = arith.constant 3.125000e-02 : f32
    %49 = vector.broadcast %cst_28 : f32 to vector<10x1xf32>
    %50 = arith.mulf %46, %49 : vector<10x1xf32>
    %51 = arith.mulf %48, %48 : vector<10x1xf32>
    %52 = arith.subf %50, %51 : vector<10x1xf32>
    %53 = vector.broadcast %48 : vector<10x1xf32> to vector<10x32xf32>
    %54 = arith.subf %36, %53 : vector<10x32xf32>
    %cst_29 = arith.constant 9.99999974E-6 : f32
    %55 = vector.broadcast %cst_29 : f32 to vector<10x1xf32>
    %56 = arith.addf %52, %55 : vector<10x1xf32>
    %57 = math.rsqrt %56 : vector<10x1xf32>
    %58 = vector.broadcast %57 : vector<10x1xf32> to vector<10x32xf32>
    %59 = arith.mulf %54, %58 : vector<10x32xf32>
    %60 = vector.broadcast %40 : vector<1x32xf32> to vector<10x32xf32>
    %61 = arith.mulf %59, %60 : vector<10x32xf32>
    %62 = vector.broadcast %41 : vector<1x32xf32> to vector<10x32xf32>
    %63 = arith.addf %61, %62 : vector<10x32xf32>
    %64 = arith.truncf %63 : vector<10x32xf32> to vector<10x32xbf16>
    %65 = vector.extract_strided_slice %37 {offsets = [0, 0], sizes = [32, 96], strides = [1, 1]} : vector<32x128xbf16> to vector<32x96xbf16>
    %cst_30 = arith.constant dense<0.000000e+00> : vector<10x96xf32>
    %66 = tpu.matmul %64, %65, %cst_30 {dimension_numbers = #tpu.dot_dimension_numbers<[1], [0], [0], [1], [0, 0, 1, 1], [], []>} : vector<10x32xbf16>, vector<32x96xbf16>, vector<10x96xf32> -> vector<10x96xf32>
    %67 = vector.extract_strided_slice %38 {offsets = [0, 0], sizes = [1, 96], strides = [1, 1]} : vector<1x128xf32> to vector<1x96xf32>
    %68 = vector.broadcast %67 : vector<1x96xf32> to vector<10x96xf32>
    %69 = arith.addf %66, %68 : vector<10x96xf32>
    %70 = vector.extract_strided_slice %69 {offsets = [0, 0], sizes = [10, 32], strides = [1, 1]} : vector<10x96xf32> to vector<10x32xf32>
    %71 = vector.extract_strided_slice %69 {offsets = [0, 32], sizes = [10, 64], strides = [1, 1]} : vector<10x96xf32> to vector<10x64xf32>
    %72 = tpu.concatenate %71, %71 in 0 : vector<10x64xf32>, vector<10x64xf32> -> vector<20x64xf32>
    %73 = arith.mulf %72, %6 : vector<20x64xf32>
    %74 = vector.extract_strided_slice %73 {offsets = [0, 0], sizes = [20, 32], strides = [1, 1]} : vector<20x64xf32> to vector<20x32xf32>
    %75 = arith.truncf %74 : vector<20x32xf32> to vector<20x32xbf16>
    %76 = vector.extract_strided_slice %73 {offsets = [0, 32], sizes = [20, 32], strides = [1, 1]} : vector<20x64xf32> to vector<20x32xf32>
    %77 = arith.truncf %76 : vector<20x32xf32> to vector<20x32xbf16>
    %78 = arith.truncf %70 : vector<10x32xf32> to vector<10x32xbf16>
    %cst_31 = arith.constant dense<0.000000e+00> : vector<10x20xf32>
    %79 = tpu.matmul %78, %75, %cst_31 {dimension_numbers = #tpu.dot_dimension_numbers<[1], [1], [0], [0], [0, 0, 1, 0], [], []>} : vector<10x32xbf16>, vector<20x32xbf16>, vector<10x20xf32> -> vector<10x20xf32>
    %80 = arith.addf %79, %5 : vector<10x20xf32>
    %81 = vector.extract_strided_slice %80 {offsets = [0, 0], sizes = [10, 10], strides = [1, 1]} : vector<10x20xf32> to vector<10x10xf32>
    %82 = vector.extract_strided_slice %80 {offsets = [0, 10], sizes = [10, 10], strides = [1, 1]} : vector<10x20xf32> to vector<10x10xf32>
    %cst_32 = arith.constant dense<0xFF800000> : vector<10xf32>
    %83 = vector.multi_reduction <maximumf>, %81, %cst_32 [1] : vector<10x10xf32> to vector<10xf32>
    %84 = vector.shape_cast %83 : vector<10xf32> to vector<10x1xf32>
    %85 = vector.broadcast %84 : vector<10x1xf32> to vector<10x10xf32>
    %86 = arith.subf %81, %85 : vector<10x10xf32>
    %87 = math.exp %86 : vector<10x10xf32>
    %cst_33 = arith.constant dense<0xFF800000> : vector<10xf32>
    %88 = vector.multi_reduction <maximumf>, %82, %cst_33 [1] : vector<10x10xf32> to vector<10xf32>
    %89 = vector.shape_cast %88 : vector<10xf32> to vector<10x1xf32>
    %90 = vector.broadcast %89 : vector<10x1xf32> to vector<10x10xf32>
    %91 = arith.subf %82, %90 : vector<10x10xf32>
    %92 = math.exp %91 : vector<10x10xf32>
    %cst_34 = arith.constant dense<0.000000e+00> : vector<10xf32>
    %93 = vector.multi_reduction <add>, %87, %cst_34 [1] : vector<10x10xf32> to vector<10xf32>
    %94 = vector.shape_cast %93 : vector<10xf32> to vector<10x1xf32>
    %95 = tpu.reciprocal %94 {approx = true} : vector<10x1xf32> -> vector<10x1xf32>
    %96 = vector.broadcast %95 : vector<10x1xf32> to vector<10x10xf32>
    %97 = arith.mulf %87, %96 : vector<10x10xf32>
    %cst_35 = arith.constant dense<0.000000e+00> : vector<10xf32>
    %98 = vector.multi_reduction <add>, %92, %cst_35 [1] : vector<10x10xf32> to vector<10xf32>
    %99 = vector.shape_cast %98 : vector<10xf32> to vector<10x1xf32>
    %100 = tpu.reciprocal %99 {approx = true} : vector<10x1xf32> -> vector<10x1xf32>
    %101 = vector.broadcast %100 : vector<10x1xf32> to vector<10x10xf32>
    %102 = arith.mulf %92, %101 : vector<10x10xf32>
    %103 = tpu.concatenate %97, %102 in 1 : vector<10x10xf32>, vector<10x10xf32> -> vector<10x20xf32>
    %104 = arith.truncf %103 : vector<10x20xf32> to vector<10x20xbf16>
    %cst_36 = arith.constant dense<0.000000e+00> : vector<10x32xf32>
    %105 = tpu.matmul %104, %77, %cst_36 {dimension_numbers = #tpu.dot_dimension_numbers<[1], [0], [0], [1], [0, 0, 1, 1], [], []>} : vector<10x20xbf16>, vector<20x32xbf16>, vector<10x32xf32> -> vector<10x32xf32>
    %106 = arith.truncf %105 : vector<10x32xf32> to vector<10x32xbf16>
    %107 = vector.extract_strided_slice %37 {offsets = [0, 96], sizes = [32, 32], strides = [1, 1]} : vector<32x128xbf16> to vector<32x32xbf16>
    %cst_37 = arith.constant dense<0.000000e+00> : vector<10x32xf32>
    %108 = tpu.matmul %106, %107, %cst_37 {dimension_numbers = #tpu.dot_dimension_numbers<[1], [0], [0], [1], [0, 0, 1, 1], [], []>} : vector<10x32xbf16>, vector<32x32xbf16>, vector<10x32xf32> -> vector<10x32xf32>
    %109 = vector.extract_strided_slice %38 {offsets = [0, 96], sizes = [1, 32], strides = [1, 1]} : vector<1x128xf32> to vector<1x32xf32>
    %110 = vector.broadcast %109 : vector<1x32xf32> to vector<10x32xf32>
    %111 = arith.addf %108, %110 : vector<10x32xf32>
    %112 = arith.addf %36, %111 : vector<10x32xf32>
    %113 = vector.extract_strided_slice %39 {offsets = [0, 64], sizes = [1, 32], strides = [1, 1]} : vector<1x128xf32> to vector<1x32xf32>
    %114 = vector.extract_strided_slice %39 {offsets = [0, 96], sizes = [1, 32], strides = [1, 1]} : vector<1x128xf32> to vector<1x32xf32>
    %cst_38 = arith.constant dense<0.000000e+00> : vector<10xf32>
    %115 = vector.multi_reduction <add>, %112, %cst_38 [1] : vector<10x32xf32> to vector<10xf32>
    %116 = vector.shape_cast %115 : vector<10xf32> to vector<10x1xf32>
    %117 = arith.mulf %112, %112 : vector<10x32xf32>
    %cst_39 = arith.constant dense<0.000000e+00> : vector<10xf32>
    %118 = vector.multi_reduction <add>, %117, %cst_39 [1] : vector<10x32xf32> to vector<10xf32>
    %119 = vector.shape_cast %118 : vector<10xf32> to vector<10x1xf32>
    %cst_40 = arith.constant 3.125000e-02 : f32
    %120 = vector.broadcast %cst_40 : f32 to vector<10x1xf32>
    %121 = arith.mulf %116, %120 : vector<10x1xf32>
    %cst_41 = arith.constant 3.125000e-02 : f32
    %122 = vector.broadcast %cst_41 : f32 to vector<10x1xf32>
    %123 = arith.mulf %119, %122 : vector<10x1xf32>
    %124 = arith.mulf %121, %121 : vector<10x1xf32>
    %125 = arith.subf %123, %124 : vector<10x1xf32>
    %126 = vector.broadcast %121 : vector<10x1xf32> to vector<10x32xf32>
    %127 = arith.subf %112, %126 : vector<10x32xf32>
    %cst_42 = arith.constant 9.99999974E-6 : f32
    %128 = vector.broadcast %cst_42 : f32 to vector<10x1xf32>
    %129 = arith.addf %125, %128 : vector<10x1xf32>
    %130 = math.rsqrt %129 : vector<10x1xf32>
    %131 = vector.broadcast %130 : vector<10x1xf32> to vector<10x32xf32>
    %132 = arith.mulf %127, %131 : vector<10x32xf32>
    %133 = vector.broadcast %113 : vector<1x32xf32> to vector<10x32xf32>
    %134 = arith.mulf %132, %133 : vector<10x32xf32>
    %135 = vector.broadcast %114 : vector<1x32xf32> to vector<10x32xf32>
    %136 = arith.addf %134, %135 : vector<10x32xf32>
    %c5 = arith.constant 5 : index
    %c0_43 = arith.constant 0 : index
    %137 = vector.load %arg4[%c5, %c0_43] : memref<64x128xf32, #tpu.memory_space<vmem>>, vector<1x128xf32>
    %138 = arith.truncf %136 : vector<10x32xf32> to vector<10x32xbf16>
    %139 = vector.extract_strided_slice %7 {offsets = [0, 0], sizes = [32, 64], strides = [1, 1]} : vector<32x128xbf16> to vector<32x64xbf16>
    %cst_44 = arith.constant dense<0.000000e+00> : vector<10x64xf32>
    %140 = tpu.matmul %138, %139, %cst_44 {dimension_numbers = #tpu.dot_dimension_numbers<[1], [0], [0], [1], [0, 0, 1, 1], [], []>} : vector<10x32xbf16>, vector<32x64xbf16>, vector<10x64xf32> -> vector<10x64xf32>
    %141 = vector.extract_strided_slice %137 {offsets = [0, 0], sizes = [1, 64], strides = [1, 1]} : vector<1x128xf32> to vector<1x64xf32>
    %142 = vector.broadcast %141 : vector<1x64xf32> to vector<10x64xf32>
    %143 = arith.addf %140, %142 : vector<10x64xf32>
    %cst_45 = arith.constant 1.702000e+00 : f32
    %144 = vector.broadcast %cst_45 : f32 to vector<10x64xf32>
    %145 = arith.mulf %144, %143 : vector<10x64xf32>
    %146 = arith.negf %145 : vector<10x64xf32>
    %147 = math.exp %146 : vector<10x64xf32>
    %cst_46 = arith.constant 1.000000e+00 : f32
    %148 = vector.broadcast %cst_46 : f32 to vector<10x64xf32>
    %149 = arith.addf %148, %147 : vector<10x64xf32>
    %150 = arith.divf %148, %149 : vector<10x64xf32>
    %151 = arith.mulf %143, %150 : vector<10x64xf32>
    %152 = arith.truncf %151 : vector<10x64xf32> to vector<10x64xbf16>
    %153 = vector.extract_strided_slice %8 {offsets = [0, 0], sizes = [64, 32], strides = [1, 1]} : vector<64x128xbf16> to vector<64x32xbf16>
    %cst_47 = arith.constant dense<0.000000e+00> : vector<10x32xf32>
    %154 = tpu.matmul %152, %153, %cst_47 {dimension_numbers = #tpu.dot_dimension_numbers<[1], [0], [0], [1], [0, 0, 1, 1], [], []>} : vector<10x64xbf16>, vector<64x32xbf16>, vector<10x32xf32> -> vector<10x32xf32>
    %155 = vector.extract_strided_slice %137 {offsets = [0, 64], sizes = [1, 32], strides = [1, 1]} : vector<1x128xf32> to vector<1x32xf32>
    %156 = vector.broadcast %155 : vector<1x32xf32> to vector<10x32xf32>
    %157 = arith.addf %154, %156 : vector<10x32xf32>
    %158 = arith.addf %112, %157 : vector<10x32xf32>
    %c32_48 = arith.constant 32 : index
    %c0_49 = arith.constant 0 : index
    %159 = vector.load %arg3[%c32_48, %c0_49] : memref<160x128xbf16, #tpu.memory_space<vmem>>, vector<32x128xbf16>
    %c4 = arith.constant 4 : index
    %c0_50 = arith.constant 0 : index
    %160 = vector.load %arg4[%c4, %c0_50] : memref<64x128xf32, #tpu.memory_space<vmem>>, vector<1x128xf32>
    %c2 = arith.constant 2 : index
    %c0_51 = arith.constant 0 : index
    %161 = vector.load %arg4[%c2, %c0_51] : memref<64x128xf32, #tpu.memory_space<vmem>>, vector<1x128xf32>
    %162 = vector.extract_strided_slice %161 {offsets = [0, 0], sizes = [1, 32], strides = [1, 1]} : vector<1x128xf32> to vector<1x32xf32>
    %163 = vector.extract_strided_slice %161 {offsets = [0, 32], sizes = [1, 32], strides = [1, 1]} : vector<1x128xf32> to vector<1x32xf32>
    %cst_52 = arith.constant dense<0.000000e+00> : vector<10xf32>
    %164 = vector.multi_reduction <add>, %158, %cst_52 [1] : vector<10x32xf32> to vector<10xf32>
    %165 = vector.shape_cast %164 : vector<10xf32> to vector<10x1xf32>
    %166 = arith.mulf %158, %158 : vector<10x32xf32>
    %cst_53 = arith.constant dense<0.000000e+00> : vector<10xf32>
    %167 = vector.multi_reduction <add>, %166, %cst_53 [1] : vector<10x32xf32> to vector<10xf32>
    %168 = vector.shape_cast %167 : vector<10xf32> to vector<10x1xf32>
    %cst_54 = arith.constant 3.125000e-02 : f32
    %169 = vector.broadcast %cst_54 : f32 to vector<10x1xf32>
    %170 = arith.mulf %165, %169 : vector<10x1xf32>
    %cst_55 = arith.constant 3.125000e-02 : f32
    %171 = vector.broadcast %cst_55 : f32 to vector<10x1xf32>
    %172 = arith.mulf %168, %171 : vector<10x1xf32>
    %173 = arith.mulf %170, %170 : vector<10x1xf32>
    %174 = arith.subf %172, %173 : vector<10x1xf32>
    %175 = vector.broadcast %170 : vector<10x1xf32> to vector<10x32xf32>
    %176 = arith.subf %158, %175 : vector<10x32xf32>
    %cst_56 = arith.constant 9.99999974E-6 : f32
    %177 = vector.broadcast %cst_56 : f32 to vector<10x1xf32>
    %178 = arith.addf %174, %177 : vector<10x1xf32>
    %179 = math.rsqrt %178 : vector<10x1xf32>
    %180 = vector.broadcast %179 : vector<10x1xf32> to vector<10x32xf32>
    %181 = arith.mulf %176, %180 : vector<10x32xf32>
    %182 = vector.broadcast %162 : vector<1x32xf32> to vector<10x32xf32>
    %183 = arith.mulf %181, %182 : vector<10x32xf32>
    %184 = vector.broadcast %163 : vector<1x32xf32> to vector<10x32xf32>
    %185 = arith.addf %183, %184 : vector<10x32xf32>
    %186 = arith.truncf %185 : vector<10x32xf32> to vector<10x32xbf16>
    %187 = vector.extract_strided_slice %159 {offsets = [0, 0], sizes = [32, 96], strides = [1, 1]} : vector<32x128xbf16> to vector<32x96xbf16>
    %cst_57 = arith.constant dense<0.000000e+00> : vector<10x96xf32>
    %188 = tpu.matmul %186, %187, %cst_57 {dimension_numbers = #tpu.dot_dimension_numbers<[1], [0], [0], [1], [0, 0, 1, 1], [], []>} : vector<10x32xbf16>, vector<32x96xbf16>, vector<10x96xf32> -> vector<10x96xf32>
    %189 = vector.extract_strided_slice %160 {offsets = [0, 0], sizes = [1, 96], strides = [1, 1]} : vector<1x128xf32> to vector<1x96xf32>
    %190 = vector.broadcast %189 : vector<1x96xf32> to vector<10x96xf32>
    %191 = arith.addf %188, %190 : vector<10x96xf32>
    %192 = vector.extract_strided_slice %191 {offsets = [0, 0], sizes = [10, 32], strides = [1, 1]} : vector<10x96xf32> to vector<10x32xf32>
    %193 = vector.extract_strided_slice %191 {offsets = [0, 32], sizes = [10, 64], strides = [1, 1]} : vector<10x96xf32> to vector<10x64xf32>
    %194 = tpu.concatenate %193, %193 in 0 : vector<10x64xf32>, vector<10x64xf32> -> vector<20x64xf32>
    %195 = arith.mulf %194, %6 : vector<20x64xf32>
    %196 = vector.extract_strided_slice %195 {offsets = [0, 0], sizes = [20, 32], strides = [1, 1]} : vector<20x64xf32> to vector<20x32xf32>
    %197 = arith.truncf %196 : vector<20x32xf32> to vector<20x32xbf16>
    %198 = vector.extract_strided_slice %195 {offsets = [0, 32], sizes = [20, 32], strides = [1, 1]} : vector<20x64xf32> to vector<20x32xf32>
    %199 = arith.truncf %198 : vector<20x32xf32> to vector<20x32xbf16>
    %200 = arith.truncf %192 : vector<10x32xf32> to vector<10x32xbf16>
    %cst_58 = arith.constant dense<0.000000e+00> : vector<10x20xf32>
    %201 = tpu.matmul %200, %197, %cst_58 {dimension_numbers = #tpu.dot_dimension_numbers<[1], [1], [0], [0], [0, 0, 1, 0], [], []>} : vector<10x32xbf16>, vector<20x32xbf16>, vector<10x20xf32> -> vector<10x20xf32>
    %202 = arith.addf %201, %5 : vector<10x20xf32>
    %203 = vector.extract_strided_slice %202 {offsets = [0, 0], sizes = [10, 10], strides = [1, 1]} : vector<10x20xf32> to vector<10x10xf32>
    %204 = vector.extract_strided_slice %202 {offsets = [0, 10], sizes = [10, 10], strides = [1, 1]} : vector<10x20xf32> to vector<10x10xf32>
    %cst_59 = arith.constant dense<0xFF800000> : vector<10xf32>
    %205 = vector.multi_reduction <maximumf>, %203, %cst_59 [1] : vector<10x10xf32> to vector<10xf32>
    %206 = vector.shape_cast %205 : vector<10xf32> to vector<10x1xf32>
    %207 = vector.broadcast %206 : vector<10x1xf32> to vector<10x10xf32>
    %208 = arith.subf %203, %207 : vector<10x10xf32>
    %209 = math.exp %208 : vector<10x10xf32>
    %cst_60 = arith.constant dense<0xFF800000> : vector<10xf32>
    %210 = vector.multi_reduction <maximumf>, %204, %cst_60 [1] : vector<10x10xf32> to vector<10xf32>
    %211 = vector.shape_cast %210 : vector<10xf32> to vector<10x1xf32>
    %212 = vector.broadcast %211 : vector<10x1xf32> to vector<10x10xf32>
    %213 = arith.subf %204, %212 : vector<10x10xf32>
    %214 = math.exp %213 : vector<10x10xf32>
    %cst_61 = arith.constant dense<0.000000e+00> : vector<10xf32>
    %215 = vector.multi_reduction <add>, %209, %cst_61 [1] : vector<10x10xf32> to vector<10xf32>
    %216 = vector.shape_cast %215 : vector<10xf32> to vector<10x1xf32>
    %217 = tpu.reciprocal %216 {approx = true} : vector<10x1xf32> -> vector<10x1xf32>
    %218 = vector.broadcast %217 : vector<10x1xf32> to vector<10x10xf32>
    %219 = arith.mulf %209, %218 : vector<10x10xf32>
    %cst_62 = arith.constant dense<0.000000e+00> : vector<10xf32>
    %220 = vector.multi_reduction <add>, %214, %cst_62 [1] : vector<10x10xf32> to vector<10xf32>
    %221 = vector.shape_cast %220 : vector<10xf32> to vector<10x1xf32>
    %222 = tpu.reciprocal %221 {approx = true} : vector<10x1xf32> -> vector<10x1xf32>
    %223 = vector.broadcast %222 : vector<10x1xf32> to vector<10x10xf32>
    %224 = arith.mulf %214, %223 : vector<10x10xf32>
    %225 = tpu.concatenate %219, %224 in 1 : vector<10x10xf32>, vector<10x10xf32> -> vector<10x20xf32>
    %226 = arith.truncf %225 : vector<10x20xf32> to vector<10x20xbf16>
    %cst_63 = arith.constant dense<0.000000e+00> : vector<10x32xf32>
    %227 = tpu.matmul %226, %199, %cst_63 {dimension_numbers = #tpu.dot_dimension_numbers<[1], [0], [0], [1], [0, 0, 1, 1], [], []>} : vector<10x20xbf16>, vector<20x32xbf16>, vector<10x32xf32> -> vector<10x32xf32>
    %228 = arith.truncf %227 : vector<10x32xf32> to vector<10x32xbf16>
    %229 = vector.extract_strided_slice %159 {offsets = [0, 96], sizes = [32, 32], strides = [1, 1]} : vector<32x128xbf16> to vector<32x32xbf16>
    %cst_64 = arith.constant dense<0.000000e+00> : vector<10x32xf32>
    %230 = tpu.matmul %228, %229, %cst_64 {dimension_numbers = #tpu.dot_dimension_numbers<[1], [0], [0], [1], [0, 0, 1, 1], [], []>} : vector<10x32xbf16>, vector<32x32xbf16>, vector<10x32xf32> -> vector<10x32xf32>
    %231 = vector.extract_strided_slice %160 {offsets = [0, 96], sizes = [1, 32], strides = [1, 1]} : vector<1x128xf32> to vector<1x32xf32>
    %232 = vector.broadcast %231 : vector<1x32xf32> to vector<10x32xf32>
    %233 = arith.addf %230, %232 : vector<10x32xf32>
    %234 = arith.addf %158, %233 : vector<10x32xf32>
    %235 = vector.extract_strided_slice %161 {offsets = [0, 64], sizes = [1, 32], strides = [1, 1]} : vector<1x128xf32> to vector<1x32xf32>
    %236 = vector.extract_strided_slice %161 {offsets = [0, 96], sizes = [1, 32], strides = [1, 1]} : vector<1x128xf32> to vector<1x32xf32>
    %cst_65 = arith.constant dense<0.000000e+00> : vector<10xf32>
    %237 = vector.multi_reduction <add>, %234, %cst_65 [1] : vector<10x32xf32> to vector<10xf32>
    %238 = vector.shape_cast %237 : vector<10xf32> to vector<10x1xf32>
    %239 = arith.mulf %234, %234 : vector<10x32xf32>
    %cst_66 = arith.constant dense<0.000000e+00> : vector<10xf32>
    %240 = vector.multi_reduction <add>, %239, %cst_66 [1] : vector<10x32xf32> to vector<10xf32>
    %241 = vector.shape_cast %240 : vector<10xf32> to vector<10x1xf32>
    %cst_67 = arith.constant 3.125000e-02 : f32
    %242 = vector.broadcast %cst_67 : f32 to vector<10x1xf32>
    %243 = arith.mulf %238, %242 : vector<10x1xf32>
    %cst_68 = arith.constant 3.125000e-02 : f32
    %244 = vector.broadcast %cst_68 : f32 to vector<10x1xf32>
    %245 = arith.mulf %241, %244 : vector<10x1xf32>
    %246 = arith.mulf %243, %243 : vector<10x1xf32>
    %247 = arith.subf %245, %246 : vector<10x1xf32>
    %248 = vector.broadcast %243 : vector<10x1xf32> to vector<10x32xf32>
    %249 = arith.subf %234, %248 : vector<10x32xf32>
    %cst_69 = arith.constant 9.99999974E-6 : f32
    %250 = vector.broadcast %cst_69 : f32 to vector<10x1xf32>
    %251 = arith.addf %247, %250 : vector<10x1xf32>
    %252 = math.rsqrt %251 : vector<10x1xf32>
    %253 = vector.broadcast %252 : vector<10x1xf32> to vector<10x32xf32>
    %254 = arith.mulf %249, %253 : vector<10x32xf32>
    %255 = vector.broadcast %235 : vector<1x32xf32> to vector<10x32xf32>
    %256 = arith.mulf %254, %255 : vector<10x32xf32>
    %257 = vector.broadcast %236 : vector<1x32xf32> to vector<10x32xf32>
    %258 = arith.addf %256, %257 : vector<10x32xf32>
    %c6 = arith.constant 6 : index
    %c0_70 = arith.constant 0 : index
    %259 = vector.load %arg4[%c6, %c0_70] : memref<64x128xf32, #tpu.memory_space<vmem>>, vector<1x128xf32>
    %260 = arith.truncf %258 : vector<10x32xf32> to vector<10x32xbf16>
    %261 = vector.extract_strided_slice %7 {offsets = [0, 64], sizes = [32, 64], strides = [1, 1]} : vector<32x128xbf16> to vector<32x64xbf16>
    %cst_71 = arith.constant dense<0.000000e+00> : vector<10x64xf32>
    %262 = tpu.matmul %260, %261, %cst_71 {dimension_numbers = #tpu.dot_dimension_numbers<[1], [0], [0], [1], [0, 0, 1, 1], [], []>} : vector<10x32xbf16>, vector<32x64xbf16>, vector<10x64xf32> -> vector<10x64xf32>
    %263 = vector.extract_strided_slice %259 {offsets = [0, 0], sizes = [1, 64], strides = [1, 1]} : vector<1x128xf32> to vector<1x64xf32>
    %264 = vector.broadcast %263 : vector<1x64xf32> to vector<10x64xf32>
    %265 = arith.addf %262, %264 : vector<10x64xf32>
    %cst_72 = arith.constant 1.702000e+00 : f32
    %266 = vector.broadcast %cst_72 : f32 to vector<10x64xf32>
    %267 = arith.mulf %266, %265 : vector<10x64xf32>
    %268 = arith.negf %267 : vector<10x64xf32>
    %269 = math.exp %268 : vector<10x64xf32>
    %cst_73 = arith.constant 1.000000e+00 : f32
    %270 = vector.broadcast %cst_73 : f32 to vector<10x64xf32>
    %271 = arith.addf %270, %269 : vector<10x64xf32>
    %272 = arith.divf %270, %271 : vector<10x64xf32>
    %273 = arith.mulf %265, %272 : vector<10x64xf32>
    %274 = arith.truncf %273 : vector<10x64xf32> to vector<10x64xbf16>
    %275 = vector.extract_strided_slice %8 {offsets = [0, 32], sizes = [64, 32], strides = [1, 1]} : vector<64x128xbf16> to vector<64x32xbf16>
    %cst_74 = arith.constant dense<0.000000e+00> : vector<10x32xf32>
    %276 = tpu.matmul %274, %275, %cst_74 {dimension_numbers = #tpu.dot_dimension_numbers<[1], [0], [0], [1], [0, 0, 1, 1], [], []>} : vector<10x64xbf16>, vector<64x32xbf16>, vector<10x32xf32> -> vector<10x32xf32>
    %277 = vector.extract_strided_slice %259 {offsets = [0, 64], sizes = [1, 32], strides = [1, 1]} : vector<1x128xf32> to vector<1x32xf32>
    %278 = vector.broadcast %277 : vector<1x32xf32> to vector<10x32xf32>
    %279 = arith.addf %276, %278 : vector<10x32xf32>
    %280 = arith.addf %234, %279 : vector<10x32xf32>
    %281 = vector.extract_strided_slice %280 {offsets = [8, 0], sizes = [2, 32], strides = [1, 1]} : vector<10x32xf32> to vector<2x32xf32>
    %cst_75 = arith.constant dense<0.000000e+00> : vector<2xf32>
    %282 = vector.multi_reduction <add>, %281, %cst_75 [1] : vector<2x32xf32> to vector<2xf32>
    %283 = vector.shape_cast %282 : vector<2xf32> to vector<2x1xf32>
    %284 = arith.mulf %281, %281 : vector<2x32xf32>
    %cst_76 = arith.constant dense<0.000000e+00> : vector<2xf32>
    %285 = vector.multi_reduction <add>, %284, %cst_76 [1] : vector<2x32xf32> to vector<2xf32>
    %286 = vector.shape_cast %285 : vector<2xf32> to vector<2x1xf32>
    %cst_77 = arith.constant 3.125000e-02 : f32
    %287 = vector.broadcast %cst_77 : f32 to vector<2x1xf32>
    %288 = arith.mulf %283, %287 : vector<2x1xf32>
    %cst_78 = arith.constant 3.125000e-02 : f32
    %289 = vector.broadcast %cst_78 : f32 to vector<2x1xf32>
    %290 = arith.mulf %286, %289 : vector<2x1xf32>
    %291 = arith.mulf %288, %288 : vector<2x1xf32>
    %292 = arith.subf %290, %291 : vector<2x1xf32>
    %293 = vector.broadcast %288 : vector<2x1xf32> to vector<2x32xf32>
    %294 = arith.subf %281, %293 : vector<2x32xf32>
    %cst_79 = arith.constant 9.99999974E-6 : f32
    %295 = vector.broadcast %cst_79 : f32 to vector<2x1xf32>
    %296 = arith.addf %292, %295 : vector<2x1xf32>
    %297 = math.rsqrt %296 : vector<2x1xf32>
    %298 = vector.broadcast %297 : vector<2x1xf32> to vector<2x32xf32>
    %299 = arith.mulf %294, %298 : vector<2x32xf32>
    %300 = vector.broadcast %2 : vector<1x32xf32> to vector<2x32xf32>
    %301 = arith.mulf %299, %300 : vector<2x32xf32>
    %302 = vector.broadcast %3 : vector<1x32xf32> to vector<2x32xf32>
    %303 = arith.addf %301, %302 : vector<2x32xf32>
    %c0_80 = arith.constant 0 : index
    %c0_81 = arith.constant 0 : index
    %304 = vector.load %arg5[%c0_80, %c0_81] : memref<2x32xf32, #tpu.memory_space<vmem>>, vector<2x32xf32>
    tpu.vector_store %arg5[%c0_80, %c0_81], %303 {strides = array<i32>} : memref<2x32xf32, #tpu.memory_space<vmem>>, vector<2x32xf32>,
    return
  }
  func.func @transform_0(%arg0: i32) -> (i32, i32) {
    %c0_i32 = arith.constant 0 : i32
    %c0_i32_0 = arith.constant 0 : i32
    %c0_i32_1 = arith.constant 0 : i32
    return %c0_i32, %c0_i32_0 : i32, i32
  }
  func.func @transform_1(%arg0: i32) -> (i32, i32) {
    %c0_i32 = arith.constant 0 : i32
    %c0_i32_0 = arith.constant 0 : i32
    %c0_i32_1 = arith.constant 0 : i32
    return %c0_i32, %c0_i32_0 : i32, i32
  }
  func.func @transform_2(%arg0: i32) -> (i32, i32) {
    %c0_i32 = arith.constant 0 : i32
    %c0_i32_0 = arith.constant 0 : i32
    %c0_i32_1 = arith.constant 0 : i32
    return %c0_i32, %c0_i32_0 : i32, i32
  }
  func.func @transform_3(%arg0: i32) -> (i32, i32) {
    %c0_i32 = arith.constant 0 : i32
    %c0_i32_0 = arith.constant 0 : i32
    %c0_i32_1 = arith.constant 0 : i32
    return %c0_i32, %c0_i32_0 : i32, i32
  }
  func.func @transform_4(%arg0: i32) -> (i32, i32) {
    %c0_i32 = arith.constant 0 : i32
    %c0_i32_0 = arith.constant 0 : i32
    %c0_i32_1 = arith.constant 0 : i32
    return %c0_i32, %c0_i32_0 : i32, i32
  }
}

</mosaic_0001>

<llo_original>
// kernel: _clip_forward.1
$region0: #{_clip_forward.1}
  #allocation0 [shape = 'u32[]', space=smem, size = 0x4, offset = 0x4, fixed_abs, tag = 'smem constant byte address 0x4 - core index']
  #allocation1 [shape = 'u32[144,128]{1,0:T(1,128)}', space=vmem, size = 0x12000, scoped, tag = 'internal scratch']
  %s0 = inlined_call_operand.vmem [shape: f32[8,192], index: 0, kind: input, shape index: {}]
  %s1 = inlined_call_operand.vmem [shape: f32[192,32], index: 1, kind: input, shape index: {}]
  %s2 = inlined_call_operand.vmem [shape: bf16[160,128], index: 2, kind: input, shape index: {}]
  %s3 = inlined_call_operand.vmem [shape: f32[64,128], index: 3, kind: input, shape index: {}]
  %s4 = inlined_call_operand.hbm [shape: f32[2,32], index: 4, kind: output, shape index: {}]
  %s5 = sld [smem:[#allocation0]]
  $region26: #{_clip_forward.1} parent=0
    _
  %s7 = ssub.s32 1, %s5
  %s8 = scalar_select 0, %s7, %s5
  $region1: #{_clip_forward.1} parent=0
    #allocation2 [shape = 'u8[1024]{0}', space=vmem, size = 0x400, scoped, tag = 'output window, operand 0, single buffered']
    #allocation3 [shape = 's32[1]{0}', space=sflag, size = 0x4, scoped, tag = 'scoped memory for _clip_forward.1']
    %9 = vsyncpa [#allocation3], 0
    // Predicated region
    $region2: #{_clip_forward.1} parent=1 // pred_check
      _
    $region3: #{_clip_forward.1} parent=1 // pred_check_branch
      %11 = sbr.rel (0) target = $region5
    $region4: #{_clip_forward.1} parent=1 // pred_region
      _
    $region5: #{_clip_forward.1} parent=1 // pred_fallthru
      _
    // Predicated region
    $region6: #{_clip_forward.1} parent=1 // pred_check
      _
    $region7: #{_clip_forward.1} parent=1 // pred_check_branch
      %13 = sbr.rel (0) target = $region9
    $region8: #{_clip_forward.1} parent=1 // pred_region
      _
    $region9: #{_clip_forward.1} parent=1 // pred_fallthru
      _
    // Predicated region
    $region10: #{_clip_forward.1} parent=1 // pred_check
      _
    $region11: #{_clip_forward.1} parent=1 // pred_check_branch
      %15 = sbr.rel (0) target = $region13
    $region12: #{_clip_forward.1} parent=1 // pred_region
      _
    $region13: #{_clip_forward.1} parent=1 // pred_fallthru
      _
    // Predicated region
    $region14: #{_clip_forward.1} parent=1 // pred_check
      _
    $region15: #{_clip_forward.1} parent=1 // pred_check_branch
      %17 = sbr.rel (0) target = $region17
    $region16: #{_clip_forward.1} parent=1 // pred_region
      _
    $region17: #{_clip_forward.1} parent=1 // pred_fallthru
      _
    %v19 = vld [vmem:[%s3] sm:$0x1]
    %v20 = vld [vmem:[%s3 + $0x8] sm:$0xff]
    %v21 = vld [vmem:[%s3 + $0x10] sm:$0x3]
    %v22 = vld [vmem:[%s3 + $0x18] sm:$0xff]
    %v23 = vld [vmem:[%s3 + $0x20] sm:$0x3]
    %v24 = vld [vmem:[%s3 + $0x28] sm:$0xff]
    %v25 = vld [vmem:[%s3 + $0x30] sm:$0xff]
    %v26 = vld [vmem:[%s3 + $0x38] sm:$0xf]
    %v27 = vld [vmem:[%s2 + $0x20] sm:$0xf]
    %v28 = vld [vmem:[%s2 + $0x24] sm:$0xf]
    %v29 = vld [vmem:[%s2 + $0x28] sm:$0xf]
    %v30 = vld [vmem:[%s2 + $0x2c] sm:$0xf]
    %v31 = vld [vmem:[%s2 + $0x30] sm:$0xf]
    %v32 = vld [vmem:[%s2 + $0x34] sm:$0xf]
    %v33 = vld [vmem:[%s2 + $0x38] sm:$0xf]
    %v34 = vld [vmem:[%s2 + $0x3c] sm:$0xf]
    %v35 = vld [vmem:[%s2 + $0x40] sm:$0xf]
    %v36 = vld [vmem:[%s2 + $0x44] sm:$0xf]
    %v37 = vld [vmem:[%s2 + $0x48] sm:$0xf]
    %v38 = vld [vmem:[%s2 + $0x4c] sm:$0xf]
    %v39 = vld [vmem:[%s0] sm:$0xff]
    %v40 = vld [vmem:[%s0 + $0x8] sm:$0xff]
    %v41 = vld [vmem:[%s1] sm:$0xff]
    %v42 = vld [vmem:[%s1 + $0x8] sm:$0xff]
    %v43 = vld [vmem:[%s1 + $0x10] sm:$0xff]
    %v44 = vld [vmem:[%s1 + $0x18] sm:$0xff]
    %v45 = vld [vmem:[%s1 + $0x20] sm:$0xff]
    %v46 = vld [vmem:[%s1 + $0x28] sm:$0xff]
    %v47 = vld [vmem:[%s1 + $0x30] sm:$0xff]
    %v48 = vld [vmem:[%s1 + $0x38] sm:$0xff]
    %v49 = vld [vmem:[%s1 + $0x40] sm:$0xff]
    %v50 = vld [vmem:[%s1 + $0x48] sm:$0xff]
    %v51 = vld [vmem:[%s1 + $0x50] sm:$0xff]
    %v52 = vld [vmem:[%s1 + $0x58] sm:$0xff]
    %v53 = vld [vmem:[%s1 + $0x60] sm:$0xff]
    %v54 = vld [vmem:[%s1 + $0x68] sm:$0xff]
    %v55 = vld [vmem:[%s1 + $0x70] sm:$0xff]
    %v56 = vld [vmem:[%s1 + $0x78] sm:$0xff]
    %v57 = vld [vmem:[%s1 + $0x80] sm:$0xff]
    %v58 = vld [vmem:[%s1 + $0x88] sm:$0xff]
    %v59 = vld [vmem:[%s1 + $0x90] sm:$0xff]
    %v60 = vld [vmem:[%s1 + $0x98] sm:$0xff]
    %v61 = vld [vmem:[%s1 + $0xa0] sm:$0xff]
    %v62 = vld [vmem:[%s1 + $0xa8] sm:$0xff]
    %v63 = vld [vmem:[%s1 + $0xb0] sm:$0xff]
    %v64 = vld [vmem:[%s1 + $0xb8] sm:$0xff]
    %vm65 = vcmask 523264
    %v67 = vsel %vm65, %v40, 0
    %69 = vmatprep.subr.mxu0 0.0
    %70 = vmatpush1.msra.mxu0 %v41
    %71 = vmatprep.subr.mxu0 0.0
    %72 = vmatpush1.msra.mxu0 %v42
    %73 = vmatprep.subr.mxu0 0.0
    %74 = vmatpush1.msra.mxu0 %v43
    %75 = vmatprep.subr.mxu0 0.0
    %76 = vmatpush1.msra.mxu0 %v44
    %77 = vmatprep.subr.mxu0 0.0
    %78 = vmatpush1.msra.mxu0 %v45
    %79 = vmatprep.subr.mxu0 0.0
    %80 = vmatpush1.msra.mxu0 %v46
    %81 = vmatprep.subr.mxu0 0.0
    %82 = vmatpush1.msra.mxu0 %v47
    %83 = vmatprep.subr.mxu0 0.0
    %84 = vmatpush1.msra.mxu0 %v48
    %85 = vmatprep.subr.mxu0 0.0
    %86 = vmatpush1.msra.mxu0 %v49
    %87 = vmatprep.subr.mxu0 0.0
    %88 = vmatpush1.msra.mxu0 %v50
    %89 = vmatprep.subr.mxu0 0.0
    %90 = vmatpush1.msra.mxu0 %v51
    %91 = vmatprep.subr.mxu0 0.0
    %92 = vmatpush1.msra.mxu0 %v52
    %93 = vmatprep.subr.mxu0 0.0
    %94 = vmatpush1.msra.mxu0 %v53
    %95 = vmatprep.subr.mxu0 0.0
    %96 = vmatpush1.msra.mxu0 %v54
    %97 = vmatprep.subr.mxu0 0.0
    %98 = vmatpush1.msra.mxu0 %v55
    %99 = vmatprep.subr.mxu0 0.0
    %100 = vmatpush1.msra.mxu0 %v56
    %101 = vmatprep.subr.mxu0 0.0
    %102 = vmatpush1.msra.mxu0 %v57
    %103 = vmatprep.subr.mxu0 0.0
    %104 = vmatpush1.msra.mxu0 %v58
    %105 = vmatprep.subr.mxu0 0.0
    %106 = vmatpush1.msra.mxu0 %v59
    %107 = vmatprep.subr.mxu0 0.0
    %108 = vmatpush1.msra.mxu0 %v60
    %109 = vmatprep.subr.mxu0 0.0
    %110 = vmatpush1.msra.mxu0 %v61
    %111 = vmatprep.subr.mxu0 0.0
    %112 = vmatpush1.msra.mxu0 %v62
    %113 = vmatprep.subr.mxu0 0.0
    %114 = vmatpush1.msra.mxu0 %v63
    %115 = vmatprep.subr.mxu0 0.0
    %116 = vmatpush1.msra.mxu0 %v64
    %117 = vmatprep.subr.mxu0 0.0
    %118 = vmatpush1.msra.mxu0 0.0
    %119 = vmatprep.subr.mxu0 0.0
    %120 = vmatpush1.msra.mxu0 0.0
    %121 = vmatprep.subr.mxu0 0.0
    %122 = vmatpush1.msra.mxu0 0.0
    %123 = vmatprep.subr.mxu0 0.0
    %124 = vmatpush1.msra.mxu0 0.0
    %125 = vmatprep.subr.mxu0 0.0
    %126 = vmatpush1.msra.mxu0 0.0
    %127 = vmatprep.subr.mxu0 0.0
    %128 = vmatpush1.msra.mxu0 0.0
    %129 = vmatprep.subr.mxu0 0.0
    %130 = vmatpush1.msra.mxu0 0.0
    %131 = vmatprep.subr.mxu0 0.0
    %132 = vmatpush1.msra.mxu0 0.0
    %133 = vmatprep.mubr.f32.mxu0 %v67
    %134 = vmatmul.mubr.f32.gmra.mrb[0].mxu0 %v39
    %v135 = vpop.f32.mrb[0].mxu0
    %v136 = vadd.f32 0.0, %v135
    %v137 = vpop.f32.mrb[0].mxu0
    %138 = vdwg.mxu0
    %v139 = vadd.f32 %v136, %v20
    %v140 = vadd.f32 %v21, 0.0
    %vm141 = vcmask 261120
    %v142 = vsel %vm141, %v139, 0.0
    %143 = vadd.xlane.f32.xlu0 %v142
    %v144 = vpop.xlane.xlu0 %143
    %vm145 = vcmask 254976
    %v146 = vsel %vm145, %v140, 0.0
    %147 = vadd.xlane.f32.xlu0 %v146
    %v148 = vpop.xlane.xlu0 %147
    %v149 = vmul.f32 %v139, %v139
    %v150 = vmul.f32 %v140, %v140
    %v151 = vsel %vm141, %v149, 0.0
    %152 = vadd.xlane.f32.xlu0 %v151
    %v153 = vpop.xlane.xlu0 %152
    %v154 = vsel %vm145, %v150, 0.0
    %155 = vadd.xlane.f32.xlu0 %v154
    %v156 = vpop.xlane.xlu0 %155
    %v157 = vmul.f32 %v144, 0.03125
    %v158 = vmul.f32 %v148, 0.03125
    %v159 = vmul.f32 %v153, 0.03125
    %v160 = vmul.f32 %v156, 0.03125
    %v161 = vmul.f32 %v157, %v157
    %v162 = vmul.f32 %v158, %v158
    %v163 = vsub.f32 %v159, %v161
    %v164 = vsub.f32 %v160, %v162
    %v165 = vsub.f32 %v139, %v157
    %v166 = vsub.f32 %v140, %v158
    %v167 = vadd.f32 %v163, 1e-05
    %v168 = vadd.f32 %v164, 1e-05
    %v169 = vrsqrt.pop %v167
    %v170 = vrsqrt.pop %v168
    %v171 = vmul.f32 %v165, %v169
    %v172 = vmul.f32 %v166, %v170
    %v173 = vlaneseq
    %v174 = vshrl.u32 %v173, 7
    %v175 = vsub.s32 0, %v174
    %v176 = vrot.slane %v19, %v175
    %v177 = vmul.f32 %v171, %v176
    %v178 = vmul.f32 %v172, %v176
    %180 = vrot.lane.b32.xlu0 %v176, 96
    %v181 = vpop.permute.xlu0 %180
    %v183 = vadd.f32 %v177, %v181
    %v184 = vadd.f32 %v178, %v181
    %v185 = vld [vmem:[%s2] sm:$0xf]
    %v186 = vld [vmem:[%s2 + $0x4] sm:$0xf]
    %v187 = vld [vmem:[%s2 + $0x8] sm:$0xf]
    %v188 = vld [vmem:[%s2 + $0xc] sm:$0xf]
    %v189 = vld [vmem:[%s3 + $0x3] sm:$0x1]
    %v190 = vld [vmem:[%s3 + $0x1] sm:$0x1]
    %v191 = vsel %vm141, %v183, 0.0
    %192 = vadd.xlane.f32.xlu0 %v191
    %v193 = vpop.xlane.xlu0 %192
    %v194 = vsel %vm145, %v184, 0.0
    %195 = vadd.xlane.f32.xlu0 %v194
    %v196 = vpop.xlane.xlu0 %195
    %v197 = vmul.f32 %v183, %v183
    %v198 = vmul.f32 %v184, %v184
    %v199 = vsel %vm141, %v197, 0.0
    %200 = vadd.xlane.f32.xlu0 %v199
    %v201 = vpop.xlane.xlu0 %200
    %v202 = vsel %vm145, %v198, 0.0
    %203 = vadd.xlane.f32.xlu0 %v202
    %v204 = vpop.xlane.xlu0 %203
    %v205 = vmul.f32 %v193, 0.03125
    %v206 = vmul.f32 %v196, 0.03125
    %v207 = vmul.f32 %v201, 0.03125
    %v208 = vmul.f32 %v204, 0.03125
    %v209 = vmul.f32 %v205, %v205
    %v210 = vmul.f32 %v206, %v206
    %v211 = vsub.f32 %v207, %v209
    %v212 = vsub.f32 %v208, %v210
    %v213 = vsub.f32 %v183, %v205
    %v214 = vsub.f32 %v184, %v206
    %v215 = vadd.f32 %v211, 1e-05
    %v216 = vadd.f32 %v212, 1e-05
    %v217 = vrsqrt.pop %v215
    %v218 = vrsqrt.pop %v216
    %v219 = vmul.f32 %v213, %v217
    %v220 = vmul.f32 %v214, %v218
    %v221 = vlaneseq
    %v222 = vshrl.u32 %v221, 7
    %v223 = vsub.s32 0, %v222
    %v224 = vrot.slane %v190, %v223
    %v225 = vmul.f32 %v219, %v224
    %v226 = vmul.f32 %v220, %v224
    %228 = vrot.lane.b32.xlu0 %v224, 96
    %v229 = vpop.permute.xlu0 %228
    %v231 = vadd.f32 %v225, %v229
    %v232 = vadd.f32 %v226, %v229
    %v233 = vpack.c.bf16 %v232, %v231
    %v234 = vlaneseq
    %v235 = vshrl.u32 %v234, 7
    %v236 = vsub.s32 0, %v235
    %v237 = vrot.slane %v189, %v236
    %v242 = vunpack.c.l.b16 %v185
    %v243 = vunpack.c.l.b16 %v186
    %v244 = vunpack.c.l.b16 %v187
    %v245 = vunpack.c.l.b16 %v188
    %v246 = vpack.c.b16 %v243, %v242
    %v247 = vpack.c.b16 %v245, %v244
    %v251 = vsel %vm141, %v233, 0
    %253 = vmatprep.subr.bf16.mxu0 0
    %254 = vmatpush1.bf16.msra.mxu0 %v246
    %255 = vmatprep.subr.bf16.mxu0 0
    %256 = vmatpush1.bf16.msra.mxu0 %v247
    %257 = vmatprep.subr.bf16.mxu0 0
    %258 = vmatpush1.bf16.msra.mxu0 0
    %259 = vmatprep.subr.bf16.mxu0 0
    %260 = vmatpush1.bf16.msra.mxu0 0
    %261 = vmatprep.subr.bf16.mxu0 0
    %262 = vmatpush1.bf16.msra.mxu0 0
    %263 = vmatprep.subr.bf16.mxu0 0
    %264 = vmatpush1.bf16.msra.mxu0 0
    %265 = vmatprep.subr.bf16.mxu0 0
    %266 = vmatpush1.bf16.msra.mxu0 0
    %267 = vmatprep.subr.bf16.mxu0 0
    %268 = vmatpush1.bf16.msra.mxu0 0
    %269 = vmatprep.subr.bf16.mxu0 0
    %270 = vmatpush1.bf16.msra.mxu0 0
    %271 = vmatprep.subr.bf16.mxu0 0
    %272 = vmatpush1.bf16.msra.mxu0 0
    %273 = vmatprep.subr.bf16.mxu0 0
    %274 = vmatpush1.bf16.msra.mxu0 0
    %275 = vmatprep.subr.bf16.mxu0 0
    %276 = vmatpush1.bf16.msra.mxu0 0
    %277 = vmatprep.subr.bf16.mxu0 0
    %278 = vmatpush1.bf16.msra.mxu0 0
    %279 = vmatprep.subr.bf16.mxu0 0
    %280 = vmatpush1.bf16.msra.mxu0 0
    %281 = vmatprep.subr.bf16.mxu0 0
    %282 = vmatpush1.bf16.msra.mxu0 0
    %283 = vmatprep.subr.bf16.mxu0 0
    %284 = vmatpush1.bf16.msra.mxu0 0
    %285 = vmatprep.mubr.bf16.mxu0 0
    %286 = vmatmul.mubr.bf16.gmra.mrb[0].mxu0 %v251
    %v287 = vpop.f32.mrb[0].mxu0
    %v288 = vadd.f32 %v237, %v287
    %v289 = vpop.f32.mrb[0].mxu0
    %v290 = vpop.f32.mrb[0].mxu0
    %v291 = vadd.f32 %v237, %v290
    %v292 = vpop.f32.mrb[0].mxu0
    %293 = vdwg.mxu0
    %vm296 = vcmask 1041408
    %v297 = vrot.slane %v288, 6
    %v298 = vrot.slane %v291, 6
    %v299 = vsel %vm296, %v297, %v298
    %v302 = vsel %vm296, %v291, %v297
    %306 = vrot.lane.b32.xlu0 %v24, 32
    %v307 = vpop.permute.xlu0 %306
    %308 = vrot.lane.b32.xlu0 %v25, 32
    %v309 = vpop.permute.xlu0 %308
    %310 = vrot.lane.b32.xlu0 %v26, 32
    %v311 = vpop.permute.xlu0 %310
    %v315 = vmul.f32 %v288, %v307
    %v316 = vmul.f32 %v302, %v309
    %v317 = vmul.f32 %v299, %v311
    %v318 = vpack.c.bf16 %v316, %v315
    %v319 = vpack.c.bf16 %v317, %v317
    %v320 = vpack.c.bf16 %v291, %v288
    %323 = vrot.lane.b32.xlu0 %v318, 96
    %v324 = vpop.permute.xlu0 %323
    %325 = vrot.lane.b32.xlu0 %v319, 96
    %v326 = vpop.permute.xlu0 %325
    %v328 = vsel %vm141, %v320, 0
    %v331 = vsel %vm141, %v324, 0
    %v334 = vsel %vm141, %v326, 0
    %336 = vmatprep.subr.bf16.mxu0 0
    %337 = vmatpush1.bf16.xpose.msra.mxu0 %v331
    %338 = vmatprep.subr.bf16.mxu0 0
    %339 = vmatpush1.bf16.xpose.msra.mxu0 %v334
    %340 = vmatprep.subr.bf16.mxu0 0
    %341 = vmatpush1.bf16.xpose.msra.mxu0 0
    %342 = vmatprep.subr.bf16.mxu0 0
    %343 = vmatpush1.bf16.xpose.msra.mxu0 0
    %344 = vmatprep.subr.bf16.mxu0 0
    %345 = vmatpush1.bf16.xpose.msra.mxu0 0
    %346 = vmatprep.subr.bf16.mxu0 0
    %347 = vmatpush1.bf16.xpose.msra.mxu0 0
    %348 = vmatprep.subr.bf16.mxu0 0
    %349 = vmatpush1.bf16.xpose.msra.mxu0 0
    %350 = vmatprep.subr.bf16.mxu0 0
    %351 = vmatpush1.bf16.xpose.msra.mxu0 0
    %352 = vmatprep.subr.bf16.mxu0 0
    %353 = vmatpush1.bf16.xpose.msra.mxu0 0
    %354 = vmatprep.subr.bf16.mxu0 0
    %355 = vmatpush1.bf16.xpose.msra.mxu0 0
    %356 = vmatprep.subr.bf16.mxu0 0
    %357 = vmatpush1.bf16.xpose.msra.mxu0 0
    %358 = vmatprep.subr.bf16.mxu0 0
    %359 = vmatpush1.bf16.xpose.msra.mxu0 0
    %360 = vmatprep.subr.bf16.mxu0 0
    %361 = vmatpush1.bf16.xpose.msra.mxu0 0
    %362 = vmatprep.subr.bf16.mxu0 0
    %363 = vmatpush1.bf16.xpose.msra.mxu0 0
    %364 = vmatprep.subr.bf16.mxu0 0
    %365 = vmatpush1.bf16.xpose.msra.mxu0 0
    %366 = vmatprep.subr.bf16.mxu0 0
    %367 = vmatpush1.bf16.xpose.msra.mxu0 0
    %368 = vmatprep.mubr.bf16.mxu0 0
    %369 = vmatmul.mubr.bf16.gmra.mrb[0].mxu0 %v328
    %v370 = vpop.f32.mrb[0].mxu0
    %v371 = vadd.f32 %v22, %v370
    %v372 = vpop.f32.mrb[0].mxu0
    %v373 = vpop.f32.mrb[0].mxu0
    %v374 = vadd.f32 %v23, %v373
    %v375 = vpop.f32.mrb[0].mxu0
    %376 = vdwg.mxu0
    %vm377 = vcmask 80896
    %v378 = vsel %vm377, %v371, -inf
    %379 = vmax.xlane.f32.xlu0 %v378
    %v380 = vpop.xlane.xlu0 %379
    %vm381 = vcmask 74752
    %v382 = vsel %vm381, %v374, -inf
    %383 = vmax.xlane.f32.xlu0 %v382
    %v384 = vpop.xlane.xlu0 %383
    %v385 = vsub.f32 %v371, %v380
    %v386 = vsub.f32 %v374, %v384
    %v387 = vmul.f32 %v385, 1.442695
    %v388 = vpow.pop %v387
    %v389 = vmul.f32 %v386, 1.442695
    %v390 = vpow.pop %v389
    %vm391 = vcmask 162896
    %v392 = vsel %vm391, %v371, -inf
    %393 = vmax.xlane.f32.xlu0 %v392
    %v394 = vpop.xlane.xlu0 %393
    %vm395 = vcmask 156752
    %v396 = vsel %vm395, %v374, -inf
    %397 = vmax.xlane.f32.xlu0 %v396
    %v398 = vpop.xlane.xlu0 %397
    %v399 = vsub.f32 %v371, %v394
    %v400 = vsub.f32 %v374, %v398
    %v401 = vmul.f32 %v399, 1.442695
    %v402 = vpow.pop %v401
    %v403 = vmul.f32 %v400, 1.442695
    %v404 = vpow.pop %v403
    %v405 = vsel %vm377, %v388, 0.0
    %406 = vadd.xlane.f32.xlu0 %v405
    %v407 = vpop.xlane.xlu0 %406
    %v408 = vsel %vm381, %v390, 0.0
    %409 = vadd.xlane.f32.xlu0 %v408
    %v410 = vpop.xlane.xlu0 %409
    %v411 = vrcp.pop %v407
    %v412 = vrcp.pop %v410
    %v413 = vmul.f32 %v388, %v411
    %v414 = vmul.f32 %v390, %v412
    %417 = vrot.lane.b32.xlu0 %v402, 118
    %v418 = vpop.permute.xlu0 %417
    %419 = vrot.lane.b32.xlu0 %v404, 118
    %v420 = vpop.permute.xlu0 %419
    %v423 = vsel %vm377, %v418, 0.0
    %424 = vadd.xlane.f32.xlu0 %v423
    %v425 = vpop.xlane.xlu0 %424
    %v426 = vsel %vm381, %v420, 0.0
    %427 = vadd.xlane.f32.xlu0 %v426
    %v428 = vpop.xlane.xlu0 %427
    %v429 = vrcp.pop %v425
    %v430 = vrcp.pop %v428
    %v431 = vmul.f32 %v402, %v429
    %v432 = vmul.f32 %v404, %v430
    %v433 = vsel %vm377, %v413, %v431
    %v434 = vsel %vm377, %v414, %v432
    %v435 = vpack.c.bf16 %v434, %v433
    %436 = vrot.lane.b32.xlu0 %v318, 64
    %v437 = vpop.permute.xlu0 %436
    %438 = vrot.lane.b32.xlu0 %v319, 64
    %v439 = vpop.permute.xlu0 %438
    %vm441 = vcmask 162816
    %v443 = vsel %vm441, %v435, 0
    %v446 = vsel %vm296, %v439, 0
    %448 = vmatprep.subr.bf16.mxu0 0
    %449 = vmatpush1.bf16.msra.mxu0 %v437
    %450 = vmatprep.subr.bf16.mxu0 0
    %451 = vmatpush1.bf16.msra.mxu0 %v446
    %452 = vmatprep.subr.bf16.mxu0 0
    %453 = vmatpush1.bf16.msra.mxu0 0
    %454 = vmatprep.subr.bf16.mxu0 0
    %455 = vmatpush1.bf16.msra.mxu0 0
    %456 = vmatprep.subr.bf16.mxu0 0
    %457 = vmatpush1.bf16.msra.mxu0 0
    %458 = vmatprep.subr.bf16.mxu0 0
    %459 = vmatpush1.bf16.msra.mxu0 0
    %460 = vmatprep.subr.bf16.mxu0 0
    %461 = vmatpush1.bf16.msra.mxu0 0
    %462 = vmatprep.subr.bf16.mxu0 0
    %463 = vmatpush1.bf16.msra.mxu0 0
    %464 = vmatprep.subr.bf16.mxu0 0
    %465 = vmatpush1.bf16.msra.mxu0 0
    %466 = vmatprep.subr.bf16.mxu0 0
    %467 = vmatpush1.bf16.msra.mxu0 0
    %468 = vmatprep.subr.bf16.mxu0 0
    %469 = vmatpush1.bf16.msra.mxu0 0
    %470 = vmatprep.subr.bf16.mxu0 0
    %471 = vmatpush1.bf16.msra.mxu0 0
    %472 = vmatprep.subr.bf16.mxu0 0
    %473 = vmatpush1.bf16.msra.mxu0 0
    %474 = vmatprep.subr.bf16.mxu0 0
    %475 = vmatpush1.bf16.msra.mxu0 0
    %476 = vmatprep.subr.bf16.mxu0 0
    %477 = vmatpush1.bf16.msra.mxu0 0
    %478 = vmatprep.subr.bf16.mxu0 0
    %479 = vmatpush1.bf16.msra.mxu0 0
    %480 = vmatprep.mubr.bf16.mxu0 0
    %481 = vmatmul.mubr.bf16.gmra.mrb[0].mxu0 %v443
    %v482 = vpop.f32.mrb[0].mxu0
    %v483 = vadd.f32 0.0, %v482
    %v484 = vpop.f32.mrb[0].mxu0
    %v485 = vpop.f32.mrb[0].mxu0
    %v486 = vadd.f32 0.0, %v485
    %v487 = vpop.f32.mrb[0].mxu0
    %488 = vdwg.mxu0
    %v489 = vpack.c.bf16 %v486, %v483
    %490 = vrot.lane.b32.xlu0 %v246, 32
    %v491 = vpop.permute.xlu0 %490
    %492 = vrot.lane.b32.xlu0 %v247, 32
    %v493 = vpop.permute.xlu0 %492
    %497 = vrot.lane.b32.xlu0 %v237, 32
    %v498 = vpop.permute.xlu0 %497
    %v501 = vsel %vm141, %v489, 0
    %503 = vmatprep.subr.bf16.mxu0 0
    %504 = vmatpush1.bf16.msra.mxu0 %v491
    %505 = vmatprep.subr.bf16.mxu0 0
    %506 = vmatpush1.bf16.msra.mxu0 %v493
    %507 = vmatprep.subr.bf16.mxu0 0
    %508 = vmatpush1.bf16.msra.mxu0 0
    %509 = vmatprep.subr.bf16.mxu0 0
    %510 = vmatpush1.bf16.msra.mxu0 0
    %511 = vmatprep.subr.bf16.mxu0 0
    %512 = vmatpush1.bf16.msra.mxu0 0
    %513 = vmatprep.subr.bf16.mxu0 0
    %514 = vmatpush1.bf16.msra.mxu0 0
    %515 = vmatprep.subr.bf16.mxu0 0
    %516 = vmatpush1.bf16.msra.mxu0 0
    %517 = vmatprep.subr.bf16.mxu0 0
    %518 = vmatpush1.bf16.msra.mxu0 0
    %519 = vmatprep.subr.bf16.mxu0 0
    %520 = vmatpush1.bf16.msra.mxu0 0
    %521 = vmatprep.subr.bf16.mxu0 0
    %522 = vmatpush1.bf16.msra.mxu0 0
    %523 = vmatprep.subr.bf16.mxu0 0
    %524 = vmatpush1.bf16.msra.mxu0 0
    %525 = vmatprep.subr.bf16.mxu0 0
    %526 = vmatpush1.bf16.msra.mxu0 0
    %527 = vmatprep.subr.bf16.mxu0 0
    %528 = vmatpush1.bf16.msra.mxu0 0
    %529 = vmatprep.subr.bf16.mxu0 0
    %530 = vmatpush1.bf16.msra.mxu0 0
    %531 = vmatprep.subr.bf16.mxu0 0
    %532 = vmatpush1.bf16.msra.mxu0 0
    %533 = vmatprep.subr.bf16.mxu0 0
    %534 = vmatpush1.bf16.msra.mxu0 0
    %535 = vmatprep.mubr.bf16.mxu0 0
    %536 = vmatmul.mubr.bf16.gmra.mrb[0].mxu0 %v501
    %v537 = vpop.f32.mrb[0].mxu0
    %v538 = vadd.f32 %v498, %v537
    %v539 = vpop.f32.mrb[0].mxu0
    %v540 = vpop.f32.mrb[0].mxu0
    %v541 = vadd.f32 %v498, %v540
    %v542 = vpop.f32.mrb[0].mxu0
    %543 = vdwg.mxu0
    %v544 = vadd.f32 %v183, %v538
    %v545 = vadd.f32 %v184, %v541
    %v546 = vsel %vm141, %v544, 0.0
    %547 = vadd.xlane.f32.xlu0 %v546
    %v548 = vpop.xlane.xlu0 %547
    %v549 = vsel %vm145, %v545, 0.0
    %550 = vadd.xlane.f32.xlu0 %v549
    %v551 = vpop.xlane.xlu0 %550
    %v552 = vmul.f32 %v544, %v544
    %v553 = vmul.f32 %v545, %v545
    %v554 = vsel %vm141, %v552, 0.0
    %555 = vadd.xlane.f32.xlu0 %v554
    %v556 = vpop.xlane.xlu0 %555
    %v557 = vsel %vm145, %v553, 0.0
    %558 = vadd.xlane.f32.xlu0 %v557
    %v559 = vpop.xlane.xlu0 %558
    %v560 = vmul.f32 %v548, 0.03125
    %v561 = vmul.f32 %v551, 0.03125
    %v562 = vmul.f32 %v556, 0.03125
    %v563 = vmul.f32 %v559, 0.03125
    %v564 = vmul.f32 %v560, %v560
    %v565 = vmul.f32 %v561, %v561
    %v566 = vsub.f32 %v562, %v564
    %v567 = vsub.f32 %v563, %v565
    %v568 = vsub.f32 %v544, %v560
    %v569 = vsub.f32 %v545, %v561
    %v570 = vadd.f32 %v566, 1e-05
    %v571 = vadd.f32 %v567, 1e-05
    %v572 = vrsqrt.pop %v570
    %v573 = vrsqrt.pop %v571
    %v574 = vmul.f32 %v568, %v572
    %v575 = vmul.f32 %v569, %v573
    %576 = vrot.lane.b32.xlu0 %v224, 64
    %v577 = vpop.permute.xlu0 %576
    %v579 = vmul.f32 %v574, %v577
    %v580 = vmul.f32 %v575, %v577
    %581 = vrot.lane.b32.xlu0 %v224, 32
    %v582 = vpop.permute.xlu0 %581
    %v584 = vadd.f32 %v579, %v582
    %v585 = vadd.f32 %v580, %v582
    %v586 = vld [vmem:[%s3 + $0x5] sm:$0x1]
    %v587 = vpack.c.bf16 %v585, %v584
    %v588 = vlaneseq
    %v589 = vshrl.u32 %v588, 7
    %v590 = vsub.s32 0, %v589
    %v591 = vrot.slane %v586, %v590
    %v596 = vunpack.c.l.b16 %v27
    %v597 = vunpack.c.l.b16 %v28
    %v598 = vunpack.c.l.b16 %v29
    %v599 = vunpack.c.l.b16 %v30
    %v600 = vpack.c.b16 %v597, %v596
    %v601 = vpack.c.b16 %v599, %v598
    %v605 = vsel %vm141, %v587, 0
    %607 = vmatprep.subr.bf16.mxu0 0
    %608 = vmatpush1.bf16.msra.mxu0 %v600
    %609 = vmatprep.subr.bf16.mxu0 0
    %610 = vmatpush1.bf16.msra.mxu0 %v601
    %611 = vmatprep.subr.bf16.mxu0 0
    %612 = vmatpush1.bf16.msra.mxu0 0
    %613 = vmatprep.subr.bf16.mxu0 0
    %614 = vmatpush1.bf16.msra.mxu0 0
    %615 = vmatprep.subr.bf16.mxu0 0
    %616 = vmatpush1.bf16.msra.mxu0 0
    %617 = vmatprep.subr.bf16.mxu0 0
    %618 = vmatpush1.bf16.msra.mxu0 0
    %619 = vmatprep.subr.bf16.mxu0 0
    %620 = vmatpush1.bf16.msra.mxu0 0
    %621 = vmatprep.subr.bf16.mxu0 0
    %622 = vmatpush1.bf16.msra.mxu0 0
    %623 = vmatprep.subr.bf16.mxu0 0
    %624 = vmatpush1.bf16.msra.mxu0 0
    %625 = vmatprep.subr.bf16.mxu0 0
    %626 = vmatpush1.bf16.msra.mxu0 0
    %627 = vmatprep.subr.bf16.mxu0 0
    %628 = vmatpush1.bf16.msra.mxu0 0
    %629 = vmatprep.subr.bf16.mxu0 0
    %630 = vmatpush1.bf16.msra.mxu0 0
    %631 = vmatprep.subr.bf16.mxu0 0
    %632 = vmatpush1.bf16.msra.mxu0 0
    %633 = vmatprep.subr.bf16.mxu0 0
    %634 = vmatpush1.bf16.msra.mxu0 0
    %635 = vmatprep.subr.bf16.mxu0 0
    %636 = vmatpush1.bf16.msra.mxu0 0
    %637 = vmatprep.subr.bf16.mxu0 0
    %638 = vmatpush1.bf16.msra.mxu0 0
    %639 = vmatprep.mubr.bf16.mxu0 0
    %640 = vmatmul.mubr.bf16.gmra.mrb[0].mxu0 %v605
    %v641 = vpop.f32.mrb[0].mxu0
    %v642 = vadd.f32 %v591, %v641
    %v643 = vpop.f32.mrb[0].mxu0
    %v644 = vpop.f32.mrb[0].mxu0
    %v645 = vadd.f32 %v591, %v644
    %v646 = vpop.f32.mrb[0].mxu0
    %647 = vdwg.mxu0
    %v648 = vmul.f32 %v642, 1.702
    %v649 = vmul.f32 %v645, 1.702
    %v650 = vxor.u32 %v648, 2147483648
    %v651 = vxor.u32 %v649, 2147483648
    %v652 = vmul.f32 %v650, 1.442695
    %v653 = vpow.pop %v652
    %v654 = vmul.f32 %v651, 1.442695
    %v655 = vpow.pop %v654
    %v656 = vadd.f32 %v653, 1.0
    %v657 = vadd.f32 %v655, 1.0
    %v658 = vrcp.pop %v656
    %v659 = vmul.f32 1.0, %v658
    %v660 = vrcp.pop %v657
    %v661 = vmul.f32 1.0, %v660
    %v662 = vmul.f32 %v642, %v659
    %v663 = vmul.f32 %v645, %v661
    %v664 = vpack.c.bf16 %v663, %v662
    %v673 = vunpack.c.l.b16 %v31
    %v674 = vunpack.c.l.b16 %v32
    %v675 = vunpack.c.l.b16 %v33
    %v676 = vunpack.c.l.b16 %v34
    %v677 = vunpack.c.l.b16 %v35
    %v678 = vunpack.c.l.b16 %v36
    %v679 = vunpack.c.l.b16 %v37
    %v680 = vunpack.c.l.b16 %v38
    %v681 = vpack.c.b16 %v674, %v673
    %v682 = vpack.c.b16 %v676, %v675
    %v683 = vpack.c.b16 %v678, %v677
    %v684 = vpack.c.b16 %v680, %v679
    %690 = vrot.lane.b32.xlu0 %v591, 64
    %v691 = vpop.permute.xlu0 %690
    %v694 = vsel %vm65, %v664, 0
    %696 = vmatprep.subr.bf16.mxu0 0
    %697 = vmatpush1.bf16.msra.mxu0 %v681
    %698 = vmatprep.subr.bf16.mxu0 0
    %699 = vmatpush1.bf16.msra.mxu0 %v682
    %700 = vmatprep.subr.bf16.mxu0 0
    %701 = vmatpush1.bf16.msra.mxu0 %v683
    %702 = vmatprep.subr.bf16.mxu0 0
    %703 = vmatpush1.bf16.msra.mxu0 %v684
    %704 = vmatprep.subr.bf16.mxu0 0
    %705 = vmatpush1.bf16.msra.mxu0 0
    %706 = vmatprep.subr.bf16.mxu0 0
    %707 = vmatpush1.bf16.msra.mxu0 0
    %708 = vmatprep.subr.bf16.mxu0 0
    %709 = vmatpush1.bf16.msra.mxu0 0
    %710 = vmatprep.subr.bf16.mxu0 0
    %711 = vmatpush1.bf16.msra.mxu0 0
    %712 = vmatprep.subr.bf16.mxu0 0
    %713 = vmatpush1.bf16.msra.mxu0 0
    %714 = vmatprep.subr.bf16.mxu0 0
    %715 = vmatpush1.bf16.msra.mxu0 0
    %716 = vmatprep.subr.bf16.mxu0 0
    %717 = vmatpush1.bf16.msra.mxu0 0
    %718 = vmatprep.subr.bf16.mxu0 0
    %719 = vmatpush1.bf16.msra.mxu0 0
    %720 = vmatprep.subr.bf16.mxu0 0
    %721 = vmatpush1.bf16.msra.mxu0 0
    %722 = vmatprep.subr.bf16.mxu0 0
    %723 = vmatpush1.bf16.msra.mxu0 0
    %724 = vmatprep.subr.bf16.mxu0 0
    %725 = vmatpush1.bf16.msra.mxu0 0
    %726 = vmatprep.subr.bf16.mxu0 0
    %727 = vmatpush1.bf16.msra.mxu0 0
    %728 = vmatprep.mubr.bf16.mxu0 0
    %729 = vmatmul.mubr.bf16.gmra.mrb[0].mxu0 %v694
    %v730 = vpop.f32.mrb[0].mxu0
    %v731 = vadd.f32 %v691, %v730
    %v732 = vpop.f32.mrb[0].mxu0
    %v733 = vpop.f32.mrb[0].mxu0
    %v734 = vadd.f32 %v691, %v733
    %v735 = vpop.f32.mrb[0].mxu0
    %736 = vdwg.mxu0
    %v737 = vadd.f32 %v544, %v731
    %v738 = vadd.f32 %v545, %v734
    %v739 = vld [vmem:[%s2 + $0x10] sm:$0xf]
    %v740 = vld [vmem:[%s2 + $0x14] sm:$0xf]
    %v741 = vld [vmem:[%s2 + $0x18] sm:$0xf]
    %v742 = vld [vmem:[%s2 + $0x1c] sm:$0xf]
    %v743 = vld [vmem:[%s3 + $0x4] sm:$0x1]
    %v744 = vld [vmem:[%s3 + $0x2] sm:$0x1]
    %v745 = vsel %vm141, %v737, 0.0
    %746 = vadd.xlane.f32.xlu0 %v745
    %v747 = vpop.xlane.xlu0 %746
    %v748 = vsel %vm145, %v738, 0.0
    %749 = vadd.xlane.f32.xlu0 %v748
    %v750 = vpop.xlane.xlu0 %749
    %v751 = vmul.f32 %v737, %v737
    %v752 = vmul.f32 %v738, %v738
    %v753 = vsel %vm141, %v751, 0.0
    %754 = vadd.xlane.f32.xlu0 %v753
    %v755 = vpop.xlane.xlu0 %754
    %v756 = vsel %vm145, %v752, 0.0
    %757 = vadd.xlane.f32.xlu0 %v756
    %v758 = vpop.xlane.xlu0 %757
    %v759 = vmul.f32 %v747, 0.03125
    %v760 = vmul.f32 %v750, 0.03125
    %v761 = vmul.f32 %v755, 0.03125
    %v762 = vmul.f32 %v758, 0.03125
    %v763 = vmul.f32 %v759, %v759
    %v764 = vmul.f32 %v760, %v760
    %v765 = vsub.f32 %v761, %v763
    %v766 = vsub.f32 %v762, %v764
    %v767 = vsub.f32 %v737, %v759
    %v768 = vsub.f32 %v738, %v760
    %v769 = vadd.f32 %v765, 1e-05
    %v770 = vadd.f32 %v766, 1e-05
    %v771 = vrsqrt.pop %v769
    %v772 = vrsqrt.pop %v770
    %v773 = vmul.f32 %v767, %v771
    %v774 = vmul.f32 %v768, %v772
    %v775 = vlaneseq
    %v776 = vshrl.u32 %v775, 7
    %v777 = vsub.s32 0, %v776
    %v778 = vrot.slane %v744, %v777
    %v779 = vmul.f32 %v773, %v778
    %v780 = vmul.f32 %v774, %v778
    %782 = vrot.lane.b32.xlu0 %v778, 96
    %v783 = vpop.permute.xlu0 %782
    %v785 = vadd.f32 %v779, %v783
    %v786 = vadd.f32 %v780, %v783
    %v787 = vpack.c.bf16 %v786, %v785
    %v788 = vlaneseq
    %v789 = vshrl.u32 %v788, 7
    %v790 = vsub.s32 0, %v789
    %v791 = vrot.slane %v743, %v790
    %v796 = vunpack.c.l.b16 %v739
    %v797 = vunpack.c.l.b16 %v740
    %v798 = vunpack.c.l.b16 %v741
    %v799 = vunpack.c.l.b16 %v742
    %v800 = vpack.c.b16 %v797, %v796
    %v801 = vpack.c.b16 %v799, %v798
    %v805 = vsel %vm141, %v787, 0
    %807 = vmatprep.subr.bf16.mxu0 0
    %808 = vmatpush1.bf16.msra.mxu0 %v800
    %809 = vmatprep.subr.bf16.mxu0 0
    %810 = vmatpush1.bf16.msra.mxu0 %v801
    %811 = vmatprep.subr.bf16.mxu0 0
    %812 = vmatpush1.bf16.msra.mxu0 0
    %813 = vmatprep.subr.bf16.mxu0 0
    %814 = vmatpush1.bf16.msra.mxu0 0
    %815 = vmatprep.subr.bf16.mxu0 0
    %816 = vmatpush1.bf16.msra.mxu0 0
    %817 = vmatprep.subr.bf16.mxu0 0
    %818 = vmatpush1.bf16.msra.mxu0 0
    %819 = vmatprep.subr.bf16.mxu0 0
    %820 = vmatpush1.bf16.msra.mxu0 0
    %821 = vmatprep.subr.bf16.mxu0 0
    %822 = vmatpush1.bf16.msra.mxu0 0
    %823 = vmatprep.subr.bf16.mxu0 0
    %824 = vmatpush1.bf16.msra.mxu0 0
    %825 = vmatprep.subr.bf16.mxu0 0
    %826 = vmatpush1.bf16.msra.mxu0 0
    %827 = vmatprep.subr.bf16.mxu0 0
    %828 = vmatpush1.bf16.msra.mxu0 0
    %829 = vmatprep.subr.bf16.mxu0 0
    %830 = vmatpush1.bf16.msra.mxu0 0
    %831 = vmatprep.subr.bf16.mxu0 0
    %832 = vmatpush1.bf16.msra.mxu0 0
    %833 = vmatprep.subr.bf16.mxu0 0
    %834 = vmatpush1.bf16.msra.mxu0 0
    %835 = vmatprep.subr.bf16.mxu0 0
    %836 = vmatpush1.bf16.msra.mxu0 0
    %837 = vmatprep.subr.bf16.mxu0 0
    %838 = vmatpush1.bf16.msra.mxu0 0
    %839 = vmatprep.mubr.bf16.mxu0 0
    %840 = vmatmul.mubr.bf16.gmra.mrb[0].mxu0 %v805
    %v841 = vpop.f32.mrb[0].mxu0
    %v842 = vadd.f32 %v791, %v841
    %v843 = vpop.f32.mrb[0].mxu0
    %v844 = vpop.f32.mrb[0].mxu0
    %v845 = vadd.f32 %v791, %v844
    %v846 = vpop.f32.mrb[0].mxu0
    %847 = vdwg.mxu0
    %v850 = vrot.slane %v842, 6
    %v851 = vrot.slane %v845, 6
    %v852 = vsel %vm296, %v850, %v851
    %v855 = vsel %vm296, %v845, %v850
    %v856 = vmul.f32 %v842, %v307
    %v857 = vmul.f32 %v855, %v309
    %v858 = vmul.f32 %v852, %v311
    %v859 = vpack.c.bf16 %v857, %v856
    %v860 = vpack.c.bf16 %v858, %v858
    %v861 = vpack.c.bf16 %v845, %v842
    %864 = vrot.lane.b32.xlu0 %v859, 96
    %v865 = vpop.permute.xlu0 %864
    %866 = vrot.lane.b32.xlu0 %v860, 96
    %v867 = vpop.permute.xlu0 %866
    %v869 = vsel %vm141, %v861, 0
    %v872 = vsel %vm141, %v865, 0
    %v875 = vsel %vm141, %v867, 0
    %877 = vmatprep.subr.bf16.mxu0 0
    %878 = vmatpush1.bf16.xpose.msra.mxu0 %v872
    %879 = vmatprep.subr.bf16.mxu0 0
    %880 = vmatpush1.bf16.xpose.msra.mxu0 %v875
    %881 = vmatprep.subr.bf16.mxu0 0
    %882 = vmatpush1.bf16.xpose.msra.mxu0 0
    %883 = vmatprep.subr.bf16.mxu0 0
    %884 = vmatpush1.bf16.xpose.msra.mxu0 0
    %885 = vmatprep.subr.bf16.mxu0 0
    %886 = vmatpush1.bf16.xpose.msra.mxu0 0
    %887 = vmatprep.subr.bf16.mxu0 0
    %888 = vmatpush1.bf16.xpose.msra.mxu0 0
    %889 = vmatprep.subr.bf16.mxu0 0
    %890 = vmatpush1.bf16.xpose.msra.mxu0 0
    %891 = vmatprep.subr.bf16.mxu0 0
    %892 = vmatpush1.bf16.xpose.msra.mxu0 0
    %893 = vmatprep.subr.bf16.mxu0 0
    %894 = vmatpush1.bf16.xpose.msra.mxu0 0
    %895 = vmatprep.subr.bf16.mxu0 0
    %896 = vmatpush1.bf16.xpose.msra.mxu0 0
    %897 = vmatprep.subr.bf16.mxu0 0
    %898 = vmatpush1.bf16.xpose.msra.mxu0 0
    %899 = vmatprep.subr.bf16.mxu0 0
    %900 = vmatpush1.bf16.xpose.msra.mxu0 0
    %901 = vmatprep.subr.bf16.mxu0 0
    %902 = vmatpush1.bf16.xpose.msra.mxu0 0
    %903 = vmatprep.subr.bf16.mxu0 0
    %904 = vmatpush1.bf16.xpose.msra.mxu0 0
    %905 = vmatprep.subr.bf16.mxu0 0
    %906 = vmatpush1.bf16.xpose.msra.mxu0 0
    %907 = vmatprep.subr.bf16.mxu0 0
    %908 = vmatpush1.bf16.xpose.msra.mxu0 0
    %909 = vmatprep.mubr.bf16.mxu0 0
    %910 = vmatmul.mubr.bf16.gmra.mrb[0].mxu0 %v869
    %v911 = vpop.f32.mrb[0].mxu0
    %v912 = vadd.f32 %v22, %v911
    %v913 = vpop.f32.mrb[0].mxu0
    %v914 = vpop.f32.mrb[0].mxu0
    %v915 = vadd.f32 %v23, %v914
    %v916 = vpop.f32.mrb[0].mxu0
    %917 = vdwg.mxu0
    %v918 = vsel %vm377, %v912, -inf
    %919 = vmax.xlane.f32.xlu0 %v918
    %v920 = vpop.xlane.xlu0 %919
    %v921 = vsel %vm381, %v915, -inf
    %922 = vmax.xlane.f32.xlu0 %v921
    %v923 = vpop.xlane.xlu0 %922
    %v924 = vsub.f32 %v912, %v920
    %v925 = vsub.f32 %v915, %v923
    %v926 = vmul.f32 %v924, 1.442695
    %v927 = vpow.pop %v926
    %v928 = vmul.f32 %v925, 1.442695
    %v929 = vpow.pop %v928
    %v930 = vsel %vm391, %v912, -inf
    %931 = vmax.xlane.f32.xlu0 %v930
    %v932 = vpop.xlane.xlu0 %931
    %v933 = vsel %vm395, %v915, -inf
    %934 = vmax.xlane.f32.xlu0 %v933
    %v935 = vpop.xlane.xlu0 %934
    %v936 = vsub.f32 %v912, %v932
    %v937 = vsub.f32 %v915, %v935
    %v938 = vmul.f32 %v936, 1.442695
    %v939 = vpow.pop %v938
    %v940 = vmul.f32 %v937, 1.442695
    %v941 = vpow.pop %v940
    %v942 = vsel %vm377, %v927, 0.0
    %943 = vadd.xlane.f32.xlu0 %v942
    %v944 = vpop.xlane.xlu0 %943
    %v945 = vsel %vm381, %v929, 0.0
    %946 = vadd.xlane.f32.xlu0 %v945
    %v947 = vpop.xlane.xlu0 %946
    %v948 = vrcp.pop %v944
    %v949 = vrcp.pop %v947
    %v950 = vmul.f32 %v927, %v948
    %v951 = vmul.f32 %v929, %v949
    %954 = vrot.lane.b32.xlu0 %v939, 118
    %v955 = vpop.permute.xlu0 %954
    %956 = vrot.lane.b32.xlu0 %v941, 118
    %v957 = vpop.permute.xlu0 %956
    %v960 = vsel %vm377, %v955, 0.0
    %961 = vadd.xlane.f32.xlu0 %v960
    %v962 = vpop.xlane.xlu0 %961
    %v963 = vsel %vm381, %v957, 0.0
    %964 = vadd.xlane.f32.xlu0 %v963
    %v965 = vpop.xlane.xlu0 %964
    %v966 = vrcp.pop %v962
    %v967 = vrcp.pop %v965
    %v968 = vmul.f32 %v939, %v966
    %v969 = vmul.f32 %v941, %v967
    %v970 = vsel %vm377, %v950, %v968
    %v971 = vsel %vm377, %v951, %v969
    %v972 = vpack.c.bf16 %v971, %v970
    %973 = vrot.lane.b32.xlu0 %v859, 64
    %v974 = vpop.permute.xlu0 %973
    %975 = vrot.lane.b32.xlu0 %v860, 64
    %v976 = vpop.permute.xlu0 %975
    %v979 = vsel %vm441, %v972, 0
    %v982 = vsel %vm296, %v976, 0
    %984 = vmatprep.subr.bf16.mxu0 0
    %985 = vmatpush1.bf16.msra.mxu0 %v974
    %986 = vmatprep.subr.bf16.mxu0 0
    %987 = vmatpush1.bf16.msra.mxu0 %v982
    %988 = vmatprep.subr.bf16.mxu0 0
    %989 = vmatpush1.bf16.msra.mxu0 0
    %990 = vmatprep.subr.bf16.mxu0 0
    %991 = vmatpush1.bf16.msra.mxu0 0
    %992 = vmatprep.subr.bf16.mxu0 0
    %993 = vmatpush1.bf16.msra.mxu0 0
    %994 = vmatprep.subr.bf16.mxu0 0
    %995 = vmatpush1.bf16.msra.mxu0 0
    %996 = vmatprep.subr.bf16.mxu0 0
    %997 = vmatpush1.bf16.msra.mxu0 0
    %998 = vmatprep.subr.bf16.mxu0 0
    %999 = vmatpush1.bf16.msra.mxu0 0
    %1000 = vmatprep.subr.bf16.mxu0 0
    %1001 = vmatpush1.bf16.msra.mxu0 0
    %1002 = vmatprep.subr.bf16.mxu0 0
    %1003 = vmatpush1.bf16.msra.mxu0 0
    %1004 = vmatprep.subr.bf16.mxu0 0
    %1005 = vmatpush1.bf16.msra.mxu0 0
    %1006 = vmatprep.subr.bf16.mxu0 0
    %1007 = vmatpush1.bf16.msra.mxu0 0
    %1008 = vmatprep.subr.bf16.mxu0 0
    %1009 = vmatpush1.bf16.msra.mxu0 0
    %1010 = vmatprep.subr.bf16.mxu0 0
    %1011 = vmatpush1.bf16.msra.mxu0 0
    %1012 = vmatprep.subr.bf16.mxu0 0
    %1013 = vmatpush1.bf16.msra.mxu0 0
    %1014 = vmatprep.subr.bf16.mxu0 0
    %1015 = vmatpush1.bf16.msra.mxu0 0
    %1016 = vmatprep.mubr.bf16.mxu0 0
    %1017 = vmatmul.mubr.bf16.gmra.mrb[0].mxu0 %v979
    %v1018 = vpop.f32.mrb[0].mxu0
    %v1019 = vadd.f32 0.0, %v1018
    %v1020 = vpop.f32.mrb[0].mxu0
    %v1021 = vpop.f32.mrb[0].mxu0
    %v1022 = vadd.f32 0.0, %v1021
    %v1023 = vpop.f32.mrb[0].mxu0
    %1024 = vdwg.mxu0
    %v1025 = vpack.c.bf16 %v1022, %v1019
    %1026 = vrot.lane.b32.xlu0 %v800, 32
    %v1027 = vpop.permute.xlu0 %1026
    %1028 = vrot.lane.b32.xlu0 %v801, 32
    %v1029 = vpop.permute.xlu0 %1028
    %1033 = vrot.lane.b32.xlu0 %v791, 32
    %v1034 = vpop.permute.xlu0 %1033
    %v1037 = vsel %vm141, %v1025, 0
    %1039 = vmatprep.subr.bf16.mxu0 0
    %1040 = vmatpush1.bf16.msra.mxu0 %v1027
    %1041 = vmatprep.subr.bf16.mxu0 0
    %1042 = vmatpush1.bf16.msra.mxu0 %v1029
    %1043 = vmatprep.subr.bf16.mxu0 0
    %1044 = vmatpush1.bf16.msra.mxu0 0
    %1045 = vmatprep.subr.bf16.mxu0 0
    %1046 = vmatpush1.bf16.msra.mxu0 0
    %1047 = vmatprep.subr.bf16.mxu0 0
    %1048 = vmatpush1.bf16.msra.mxu0 0
    %1049 = vmatprep.subr.bf16.mxu0 0
    %1050 = vmatpush1.bf16.msra.mxu0 0
    %1051 = vmatprep.subr.bf16.mxu0 0
    %1052 = vmatpush1.bf16.msra.mxu0 0
    %1053 = vmatprep.subr.bf16.mxu0 0
    %1054 = vmatpush1.bf16.msra.mxu0 0
    %1055 = vmatprep.subr.bf16.mxu0 0
    %1056 = vmatpush1.bf16.msra.mxu0 0
    %1057 = vmatprep.subr.bf16.mxu0 0
    %1058 = vmatpush1.bf16.msra.mxu0 0
    %1059 = vmatprep.subr.bf16.mxu0 0
    %1060 = vmatpush1.bf16.msra.mxu0 0
    %1061 = vmatprep.subr.bf16.mxu0 0
    %1062 = vmatpush1.bf16.msra.mxu0 0
    %1063 = vmatprep.subr.bf16.mxu0 0
    %1064 = vmatpush1.bf16.msra.mxu0 0
    %1065 = vmatprep.subr.bf16.mxu0 0
    %1066 = vmatpush1.bf16.msra.mxu0 0
    %1067 = vmatprep.subr.bf16.mxu0 0
    %1068 = vmatpush1.bf16.msra.mxu0 0
    %1069 = vmatprep.subr.bf16.mxu0 0
    %1070 = vmatpush1.bf16.msra.mxu0 0
    %1071 = vmatprep.mubr.bf16.mxu0 0
    %1072 = vmatmul.mubr.bf16.gmra.mrb[0].mxu0 %v1037
    %v1073 = vpop.f32.mrb[0].mxu0
    %v1074 = vadd.f32 %v1034, %v1073
    %v1075 = vpop.f32.mrb[0].mxu0
    %v1076 = vpop.f32.mrb[0].mxu0
    %v1077 = vadd.f32 %v1034, %v1076
    %v1078 = vpop.f32.mrb[0].mxu0
    %1079 = vdwg.mxu0
    %v1080 = vadd.f32 %v737, %v1074
    %v1081 = vadd.f32 %v738, %v1077
    %v1082 = vsel %vm141, %v1080, 0.0
    %1083 = vadd.xlane.f32.xlu0 %v1082
    %v1084 = vpop.xlane.xlu0 %1083
    %v1085 = vsel %vm145, %v1081, 0.0
    %1086 = vadd.xlane.f32.xlu0 %v1085
    %v1087 = vpop.xlane.xlu0 %1086
    %v1088 = vmul.f32 %v1080, %v1080
    %v1089 = vmul.f32 %v1081, %v1081
    %v1090 = vsel %vm141, %v1088, 0.0
    %1091 = vadd.xlane.f32.xlu0 %v1090
    %v1092 = vpop.xlane.xlu0 %1091
    %v1093 = vsel %vm145, %v1089, 0.0
    %1094 = vadd.xlane.f32.xlu0 %v1093
    %v1095 = vpop.xlane.xlu0 %1094
    %v1096 = vmul.f32 %v1084, 0.03125
    %v1097 = vmul.f32 %v1087, 0.03125
    %v1098 = vmul.f32 %v1092, 0.03125
    %v1099 = vmul.f32 %v1095, 0.03125
    %v1100 = vmul.f32 %v1096, %v1096
    %v1101 = vmul.f32 %v1097, %v1097
    %v1102 = vsub.f32 %v1098, %v1100
    %v1103 = vsub.f32 %v1099, %v1101
    %v1104 = vsub.f32 %v1080, %v1096
    %v1105 = vsub.f32 %v1081, %v1097
    %v1106 = vadd.f32 %v1102, 1e-05
    %v1107 = vadd.f32 %v1103, 1e-05
    %v1108 = vrsqrt.pop %v1106
    %v1109 = vrsqrt.pop %v1107
    %v1110 = vmul.f32 %v1104, %v1108
    %v1111 = vmul.f32 %v1105, %v1109
    %1112 = vrot.lane.b32.xlu0 %v778, 64
    %v1113 = vpop.permute.xlu0 %1112
    %v1115 = vmul.f32 %v1110, %v1113
    %v1116 = vmul.f32 %v1111, %v1113
    %1117 = vrot.lane.b32.xlu0 %v778, 32
    %v1118 = vpop.permute.xlu0 %1117
    %v1120 = vadd.f32 %v1115, %v1118
    %v1121 = vadd.f32 %v1116, %v1118
    %v1122 = vld [vmem:[%s3 + $0x6] sm:$0x1]
    %v1123 = vpack.c.bf16 %v1121, %v1120
    %v1124 = vlaneseq
    %v1125 = vshrl.u32 %v1124, 7
    %v1126 = vsub.s32 0, %v1125
    %v1127 = vrot.slane %v1122, %v1126
    %1128 = vrot.lane.b32.xlu0 %v600, 64
    %v1129 = vpop.permute.xlu0 %1128
    %1130 = vrot.lane.b32.xlu0 %v601, 64
    %v1131 = vpop.permute.xlu0 %1130
    %v1135 = vsel %vm141, %v1123, 0
    %1137 = vmatprep.subr.bf16.mxu0 0
    %1138 = vmatpush1.bf16.msra.mxu0 %v1129
    %1139 = vmatprep.subr.bf16.mxu0 0
    %1140 = vmatpush1.bf16.msra.mxu0 %v1131
    %1141 = vmatprep.subr.bf16.mxu0 0
    %1142 = vmatpush1.bf16.msra.mxu0 0
    %1143 = vmatprep.subr.bf16.mxu0 0
    %1144 = vmatpush1.bf16.msra.mxu0 0
    %1145 = vmatprep.subr.bf16.mxu0 0
    %1146 = vmatpush1.bf16.msra.mxu0 0
    %1147 = vmatprep.subr.bf16.mxu0 0
    %1148 = vmatpush1.bf16.msra.mxu0 0
    %1149 = vmatprep.subr.bf16.mxu0 0
    %1150 = vmatpush1.bf16.msra.mxu0 0
    %1151 = vmatprep.subr.bf16.mxu0 0
    %1152 = vmatpush1.bf16.msra.mxu0 0
    %1153 = vmatprep.subr.bf16.mxu0 0
    %1154 = vmatpush1.bf16.msra.mxu0 0
    %1155 = vmatprep.subr.bf16.mxu0 0
    %1156 = vmatpush1.bf16.msra.mxu0 0
    %1157 = vmatprep.subr.bf16.mxu0 0
    %1158 = vmatpush1.bf16.msra.mxu0 0
    %1159 = vmatprep.subr.bf16.mxu0 0
    %1160 = vmatpush1.bf16.msra.mxu0 0
    %1161 = vmatprep.subr.bf16.mxu0 0
    %1162 = vmatpush1.bf16.msra.mxu0 0
    %1163 = vmatprep.subr.bf16.mxu0 0
    %1164 = vmatpush1.bf16.msra.mxu0 0
    %1165 = vmatprep.subr.bf16.mxu0 0
    %1166 = vmatpush1.bf16.msra.mxu0 0
    %1167 = vmatprep.subr.bf16.mxu0 0
    %1168 = vmatpush1.bf16.msra.mxu0 0
    %1169 = vmatprep.mubr.bf16.mxu0 0
    %1170 = vmatmul.mubr.bf16.gmra.mrb[0].mxu0 %v1135
    %v1171 = vpop.f32.mrb[0].mxu0
    %v1172 = vadd.f32 %v1127, %v1171
    %v1173 = vpop.f32.mrb[0].mxu0
    %v1174 = vpop.f32.mrb[0].mxu0
    %v1175 = vadd.f32 %v1127, %v1174
    %v1176 = vpop.f32.mrb[0].mxu0
    %1177 = vdwg.mxu0
    %v1178 = vmul.f32 %v1172, 1.702
    %v1179 = vmul.f32 %v1175, 1.702
    %v1180 = vxor.u32 %v1178, 2147483648
    %v1181 = vxor.u32 %v1179, 2147483648
    %v1182 = vmul.f32 %v1180, 1.442695
    %v1183 = vpow.pop %v1182
    %v1184 = vmul.f32 %v1181, 1.442695
    %v1185 = vpow.pop %v1184
    %v1186 = vadd.f32 %v1183, 1.0
    %v1187 = vadd.f32 %v1185, 1.0
    %v1188 = vrcp.pop %v1186
    %v1189 = vmul.f32 1.0, %v1188
    %v1190 = vrcp.pop %v1187
    %v1191 = vmul.f32 1.0, %v1190
    %v1192 = vmul.f32 %v1172, %v1189
    %v1193 = vmul.f32 %v1175, %v1191
    %v1194 = vpack.c.bf16 %v1193, %v1192
    %1195 = vrot.lane.b32.xlu0 %v681, 96
    %v1196 = vpop.permute.xlu0 %1195
    %1197 = vrot.lane.b32.xlu0 %v682, 96
    %v1198 = vpop.permute.xlu0 %1197
    %1199 = vrot.lane.b32.xlu0 %v683, 96
    %v1200 = vpop.permute.xlu0 %1199
    %1201 = vrot.lane.b32.xlu0 %v684, 96
    %v1202 = vpop.permute.xlu0 %1201
    %1208 = vrot.lane.b32.xlu0 %v1127, 64
    %v1209 = vpop.permute.xlu0 %1208
    %v1212 = vsel %vm65, %v1194, 0
    %1214 = vmatprep.subr.bf16.mxu0 0
    %1215 = vmatpush1.bf16.msra.mxu0 %v1196
    %1216 = vmatprep.subr.bf16.mxu0 0
    %1217 = vmatpush1.bf16.msra.mxu0 %v1198
    %1218 = vmatprep.subr.bf16.mxu0 0
    %1219 = vmatpush1.bf16.msra.mxu0 %v1200
    %1220 = vmatprep.subr.bf16.mxu0 0
    %1221 = vmatpush1.bf16.msra.mxu0 %v1202
    %1222 = vmatprep.subr.bf16.mxu0 0
    %1223 = vmatpush1.bf16.msra.mxu0 0
    %1224 = vmatprep.subr.bf16.mxu0 0
    %1225 = vmatpush1.bf16.msra.mxu0 0
    %1226 = vmatprep.subr.bf16.mxu0 0
    %1227 = vmatpush1.bf16.msra.mxu0 0
    %1228 = vmatprep.subr.bf16.mxu0 0
    %1229 = vmatpush1.bf16.msra.mxu0 0
    %1230 = vmatprep.subr.bf16.mxu0 0
    %1231 = vmatpush1.bf16.msra.mxu0 0
    %1232 = vmatprep.subr.bf16.mxu0 0
    %1233 = vmatpush1.bf16.msra.mxu0 0
    %1234 = vmatprep.subr.bf16.mxu0 0
    %1235 = vmatpush1.bf16.msra.mxu0 0
    %1236 = vmatprep.subr.bf16.mxu0 0
    %1237 = vmatpush1.bf16.msra.mxu0 0
    %1238 = vmatprep.subr.bf16.mxu0 0
    %1239 = vmatpush1.bf16.msra.mxu0 0
    %1240 = vmatprep.subr.bf16.mxu0 0
    %1241 = vmatpush1.bf16.msra.mxu0 0
    %1242 = vmatprep.subr.bf16.mxu0 0
    %1243 = vmatpush1.bf16.msra.mxu0 0
    %1244 = vmatprep.subr.bf16.mxu0 0
    %1245 = vmatpush1.bf16.msra.mxu0 0
    %1246 = vmatprep.mubr.bf16.mxu0 0
    %1247 = vmatmul.mubr.bf16.gmra.mrb[0].mxu0 %v1212
    %v1248 = vpop.f32.mrb[0].mxu0
    %v1249 = vpop.f32.mrb[0].mxu0
    %v1250 = vpop.f32.mrb[0].mxu0
    %v1251 = vadd.f32 %v1209, %v1250
    %v1252 = vpop.f32.mrb[0].mxu0
    %1253 = vdwg.mxu0
    %v1254 = vadd.f32 %v1081, %v1251
    %v1255 = vsel %vm145, %v1254, 0.0
    %1256 = vadd.xlane.f32.xlu0 %v1255
    %v1257 = vpop.xlane.xlu0 %1256
    %v1258 = vmul.f32 %v1254, %v1254
    %v1259 = vsel %vm145, %v1258, 0.0
    %1260 = vadd.xlane.f32.xlu0 %v1259
    %v1261 = vpop.xlane.xlu0 %1260
    %v1262 = vmul.f32 %v1257, 0.03125
    %v1263 = vmul.f32 %v1261, 0.03125
    %v1264 = vmul.f32 %v1262, %v1262
    %v1265 = vsub.f32 %v1263, %v1264
    %v1266 = vsub.f32 %v1254, %v1262
    %v1267 = vadd.f32 %v1265, 1e-05
    %v1268 = vrsqrt.pop %v1267
    %v1269 = vmul.f32 %v1266, %v1268
    %1270 = vrot.lane.b32.xlu0 %v176, 64
    %v1271 = vpop.permute.xlu0 %1270
    %v1273 = vmul.f32 %v1269, %v1271
    %1274 = vrot.lane.b32.xlu0 %v176, 32
    %v1275 = vpop.permute.xlu0 %1274
    %v1277 = vadd.f32 %v1273, %v1275
    %1278 = vst.msk [vmem:[#allocation2] sm:$0x3] %vm145, %v1277
    // Predicated region
    $region18: #{_clip_forward.1} parent=1 // pred_check
      _
    $region19: #{_clip_forward.1} parent=1 // pred_check_branch
      %1280 = sbr.rel (0) target = $region21
    $region20: #{_clip_forward.1} parent=1 // pred_region
      %s1282 = ssub.s32 32, 32
      %1283 = vsyncadd [#allocation3], %s1282
      %s1285 = sshll.u32 [#allocation2], 4
      %s1286 = int_to_ptr.vmem [resolvable:$true] %s1285
      %1288 = dma.vmem_to_hbm [thread:$0]  %s1286, 32, %s4, [#allocation3]
    $region21: #{_clip_forward.1} parent=1 // pred_fallthru
      _
    // Predicated region
    $region22: #{_clip_forward.1} parent=1 // pred_check
      _
    $region23: #{_clip_forward.1} parent=1 // pred_check_branch
      %1290 = sbr.rel (0) target = $region25
    $region24: #{_clip_forward.1} parent=1 // pred_region
      %1291 = dma.done [#allocation3], 32
    $region25: #{_clip_forward.1} parent=1 // pred_fallthru
      _
    %1292 = vsyncpa [#allocation3], 1

</llo_original>
